<compile_context>
chip_gen: v6e
topology: v6e:2x2x1
jax: 0.10.0
libtpu: 0.0.40
codegen_flags: <defaults>
</compile_context>

<pallas_src>
import jax
import jax.numpy as jnp
from jax.experimental import pallas as pl
from jax.experimental.pallas import tpu as pltpu

IN_FEATURES = 512
HIDDEN = 256


def _mlp_kernel(x_ref, w1_ref, b1_ref, w2_ref, b2_ref, o_ref):
    # ---- Layer 1 on the MXU: bf16 operands, f32 accumulate -----------------
    # w1 arrives pre-cast to bf16; the x cast is a no-op for bf16 inputs.
    x_bf = x_ref[...].astype(jnp.bfloat16)                              # (TB, 512)
    h = jnp.dot(x_bf, w1_ref[...], preferred_element_type=jnp.float32)  # (TB, 256) f32
    h = jnp.maximum(h + b1_ref[...], 0.0)                               # bias + ReLU (f32)

    # ---- Layer 2 (256 -> 1) as VPU multiply + cross-lane reduce -------------
    z = jnp.sum(h * w2_ref[...], axis=-1, keepdims=True)                # (TB, 1) f32
    z = z + b2_ref[0, 0]                                                # SMEM scalar bias

    # NOTE: (TB, 1) store is a masked 1-lane store; output bytes are tiny, so
    # the optional lane-dense output rewrite from the review is skipped.
    o_ref[...] = jax.nn.sigmoid(z).astype(o_ref.dtype)


def _choose_tb(batch, tb):
    """Pick the batch tile.

    Big enough to amortize per-step overhead, capped at 1024 so double-buffered
    x (4 MiB) fits every gen's scoped-VMEM default (incl. v5e's 16 MiB), and
    clamped so large batches get >= 2 roughly-equal grid steps (v7x megacore).
    """
    tb = max(8, min(int(tb), 1024))
    if batch <= 512:
        if batch < 8:
            return batch                       # block == full batch dim
        return min(tb, pl.cdiv(batch, 8) * 8)  # one (or few) tiles, 8-aligned
    # batch > 512: ensure at least 2 roughly equal grid steps.
    half = pl.cdiv(pl.cdiv(batch, 2), 256) * 256
    return min(tb, max(256, half))


def mlp_forward(x, w1, b1, w2, b2, *, tb=1024):
    """x: (B, 512) f32 or bf16; w1: (512,256); b1: (256,)/(1,256); w2: (256,1)/(1,256); b2: scalar-ish."""
    B, K = x.shape
    assert K == IN_FEATURES, f"expected {IN_FEATURES} input features, got {K}"

    # Canonicalize parameter layouts. w1 goes to bf16 once here (MXU operand);
    # bias / epilogue parameters stay f32. x is NOT cast in the wrapper (that
    # would add an extra HBM pass); the kernel casts it (no-op for bf16 inputs).
    w1 = w1.reshape(IN_FEATURES, HIDDEN).astype(jnp.bfloat16)
    b1 = b1.reshape(1, HIDDEN).astype(jnp.float32)
    w2_row = w2.reshape(1, HIDDEN).astype(jnp.float32)   # row vector for the VPU reduce
    b2 = b2.reshape(1, 1).astype(jnp.float32)

    tb = _choose_tb(B, tb)
    num_tiles = pl.cdiv(B, tb)

    out = pl.pallas_call(
        _mlp_kernel,
        out_shape=jax.ShapeDtypeStruct((B, 1), jnp.float32),
        grid=(num_tiles,),
        in_specs=[
            # x: streamed batch tiles (ragged last tile handled by Pallas masking).
            pl.BlockSpec((tb, IN_FEATURES), lambda i: (i, 0)),
            # w1 / b1 / w2: VMEM-resident across all grid steps.
            pl.BlockSpec((IN_FEATURES, HIDDEN), lambda i: (0, 0)),
            pl.BlockSpec((1, HIDDEN), lambda i: (0, 0)),
            pl.BlockSpec((1, HIDDEN), lambda i: (0, 0)),
            # b2: scalar via SMEM.
            pl.BlockSpec((1, 1), lambda i: (0, 0), memory_space=pltpu.SMEM),
        ],
        out_specs=pl.BlockSpec((tb, 1), lambda i: (i, 0)),
        compiler_params=pltpu.CompilerParams(
            dimension_semantics=("parallel",),
        ),
        cost_estimate=pl.CostEstimate(
            flops=2 * B * IN_FEATURES * HIDDEN + 2 * B * HIDDEN,
            bytes_accessed=B * IN_FEATURES * x.dtype.itemsize
            + IN_FEATURES * HIDDEN * 2      # bf16 w1
            + 2 * HIDDEN * 4
            + B * 4,
            transcendentals=B,
        ),
    )(x, w1, b1, w2_row, b2)

    return out


def init_params(key):
    """Deterministic init mimicking nn.Linear's uniform(-1/sqrt(fan_in), +)."""
    k1, k2, k3, k4 = jax.random.split(key, 4)
    bound1 = 1.0 / jnp.sqrt(jnp.float32(IN_FEATURES))
    bound2 = 1.0 / jnp.sqrt(jnp.float32(HIDDEN))
    # PyTorch stores W as (out, in); keep the (in, out) transpose for the kernel.
    w1 = jax.random.uniform(k1, (IN_FEATURES, HIDDEN), jnp.float32, -bound1, bound1)
    b1 = jax.random.uniform(k2, (1, HIDDEN), jnp.float32, -bound1, bound1)
    w2 = jax.random.uniform(k3, (HIDDEN, 1), jnp.float32, -bound2, bound2)
    b2 = jax.random.uniform(k4, (1, 1), jnp.float32, -bound2, bound2)
    return w1, b1, w2, b2


if __name__ == "__main__":
    key = jax.random.PRNGKey(0)
    kx, kp = jax.random.split(key)

    batch = 384
    x = jax.random.normal(kx, (batch, IN_FEATURES), jnp.float32)
    w1, b1, w2, b2 = init_params(kp)

    # Reference in plain JAX (same math as the PyTorch module, f32 throughout).
    ref = jax.nn.sigmoid(jnp.maximum(x @ w1 + b1, 0.0) @ w2 + b2)

    # 1) Default tile: whole small batch in one block, no padding copies.
    out = mlp_forward(x, w1, b1, w2, b2)
    jax.block_until_ready(out)
    assert out.shape == (batch, 1)
    assert jnp.allclose(out, ref, atol=1e-2, rtol=1e-2), float(
        jnp.max(jnp.abs(out - ref))
    )

    # 2) Forced multi-step grid with a ragged last block (exercises masking).
    out2 = mlp_forward(x, w1, b1, w2, b2, tb=256)
    jax.block_until_ready(out2)
    assert jnp.allclose(out2, ref, atol=1e-2, rtol=1e-2), float(
        jnp.max(jnp.abs(out2 - ref))
    )

    # 3) Tiny batch (block equals full batch dim, B < 8).
    out3 = mlp_forward(x[:2], w1, b1, w2, b2)
    jax.block_until_ready(out3)
    assert jnp.allclose(out3, ref[:2], atol=1e-2, rtol=1e-2)

    print("KERNEL_OK")
</pallas_src>

<mosaic_0001>
module attributes {stable_mosaic.version = 11 : i64} {
  func.func @_mlp_kernel(%arg0: i32, %arg1: memref<384x512xf32, #tpu.memory_space<vmem>>, %arg2: memref<512x256xbf16, #tpu.memory_space<vmem>>, %arg3: memref<1x256xf32, #tpu.memory_space<vmem>>, %arg4: memref<1x256xf32, #tpu.memory_space<vmem>>, %arg5: memref<1x1xf32, #tpu.memory_space<smem>>, %arg6: memref<384x1xf32, #tpu.memory_space<vmem>>) attributes {dimension_semantics = [#tpu.dimension_semantics<parallel>], iteration_bounds = array<i64: 1>, scalar_prefetch = 0 : i64, scratch_operands = 0 : i64, tpu.core_type = #tpu.core_type<tc>, window_params = [{transform_indices = @transform_0, window_bounds = array<i64: 384, 512>}, {pipeline_mode = #tpu.pipeline_mode<synchronous>, transform_indices = @transform_1, window_bounds = array<i64: 512, 256>}, {pipeline_mode = #tpu.pipeline_mode<synchronous>, transform_indices = @transform_2, window_bounds = array<i64: 1, 256>}, {pipeline_mode = #tpu.pipeline_mode<synchronous>, transform_indices = @transform_3, window_bounds = array<i64: 1, 256>}, {transform_indices = @transform_4, window_bounds = array<i64: 1, 1>}, {transform_indices = @transform_5, window_bounds = array<i64: 384, 1>}]} {
    %c0 = arith.constant 0 : index
    %c0_0 = arith.constant 0 : index
    %0 = vector.load %arg1[%c0, %c0_0] : memref<384x512xf32, #tpu.memory_space<vmem>>, vector<384x512xf32>
    %1 = arith.truncf %0 : vector<384x512xf32> to vector<384x512xbf16>
    %c0_1 = arith.constant 0 : index
    %c0_2 = arith.constant 0 : index
    %2 = vector.load %arg2[%c0_1, %c0_2] : memref<512x256xbf16, #tpu.memory_space<vmem>>, vector<512x256xbf16>
    %cst = arith.constant dense<0.000000e+00> : vector<384x256xf32>
    %3 = tpu.matmul %1, %2, %cst {dimension_numbers = #tpu.dot_dimension_numbers<[1], [0], [0], [1], [0, 0, 1, 1], [], []>} : vector<384x512xbf16>, vector<512x256xbf16>, vector<384x256xf32> -> vector<384x256xf32>
    %c0_3 = arith.constant 0 : index
    %c0_4 = arith.constant 0 : index
    %4 = vector.load %arg3[%c0_3, %c0_4] : memref<1x256xf32, #tpu.memory_space<vmem>>, vector<1x256xf32>
    %5 = vector.broadcast %4 : vector<1x256xf32> to vector<384x256xf32>
    %6 = arith.addf %3, %5 : vector<384x256xf32>
    %cst_5 = arith.constant 0.000000e+00 : f32
    %7 = vector.broadcast %cst_5 : f32 to vector<384x256xf32>
    %8 = arith.maximumf %6, %7 : vector<384x256xf32>
    %c0_6 = arith.constant 0 : index
    %c0_7 = arith.constant 0 : index
    %9 = vector.load %arg4[%c0_6, %c0_7] : memref<1x256xf32, #tpu.memory_space<vmem>>, vector<1x256xf32>
    %10 = vector.broadcast %9 : vector<1x256xf32> to vector<384x256xf32>
    %11 = arith.mulf %8, %10 : vector<384x256xf32>
    %cst_8 = arith.constant dense<0.000000e+00> : vector<384xf32>
    %12 = vector.multi_reduction <add>, %11, %cst_8 [1] : vector<384x256xf32> to vector<384xf32>
    %13 = vector.shape_cast %12 : vector<384xf32> to vector<384x1xf32>
    %c0_9 = arith.constant 0 : index
    %c0_10 = arith.constant 0 : index
    %14 = memref.load %arg5[%c0_9, %c0_10] : memref<1x1xf32, #tpu.memory_space<smem>>
    %15 = vector.broadcast %14 : f32 to vector<384x1xf32>
    %16 = arith.addf %13, %15 : vector<384x1xf32>
    %17 = arith.negf %16 : vector<384x1xf32>
    %18 = math.exp %17 : vector<384x1xf32>
    %cst_11 = arith.constant 1.000000e+00 : f32
    %19 = vector.broadcast %cst_11 : f32 to vector<384x1xf32>
    %20 = arith.addf %19, %18 : vector<384x1xf32>
    %21 = arith.divf %19, %20 : vector<384x1xf32>
    %c0_12 = arith.constant 0 : index
    %c0_13 = arith.constant 0 : index
    %22 = vector.load %arg6[%c0_12, %c0_13] : memref<384x1xf32, #tpu.memory_space<vmem>>, vector<384x1xf32>
    tpu.vector_store %arg6[%c0_12, %c0_13], %21 {strides = array<i32>} : memref<384x1xf32, #tpu.memory_space<vmem>>, vector<384x1xf32>,
    return
  }
  func.func @transform_0(%arg0: i32) -> (i32, i32) {
    %c0_i32 = arith.constant 0 : i32
    %c0_i32_0 = arith.constant 0 : i32
    return %arg0, %c0_i32 : i32, i32
  }
  func.func @transform_1(%arg0: i32) -> (i32, i32) {
    %c0_i32 = arith.constant 0 : i32
    %c0_i32_0 = arith.constant 0 : i32
    %c0_i32_1 = arith.constant 0 : i32
    return %c0_i32, %c0_i32_0 : i32, i32
  }
  func.func @transform_2(%arg0: i32) -> (i32, i32) {
    %c0_i32 = arith.constant 0 : i32
    %c0_i32_0 = arith.constant 0 : i32
    %c0_i32_1 = arith.constant 0 : i32
    return %c0_i32, %c0_i32_0 : i32, i32
  }
  func.func @transform_3(%arg0: i32) -> (i32, i32) {
    %c0_i32 = arith.constant 0 : i32
    %c0_i32_0 = arith.constant 0 : i32
    %c0_i32_1 = arith.constant 0 : i32
    return %c0_i32, %c0_i32_0 : i32, i32
  }
  func.func @transform_4(%arg0: i32) -> (i32, i32) {
    %c0_i32 = arith.constant 0 : i32
    %c0_i32_0 = arith.constant 0 : i32
    %c0_i32_1 = arith.constant 0 : i32
    return %c0_i32, %c0_i32_0 : i32, i32
  }
  func.func @transform_5(%arg0: i32) -> (i32, i32) {
    %c0_i32 = arith.constant 0 : i32
    %c0_i32_0 = arith.constant 0 : i32
    return %arg0, %c0_i32 : i32, i32
  }
}

</mosaic_0001>

<llo_original>
// kernel: tpu_custom_call.1
$region0: #{tpu_custom_call.1}
  #allocation0 [shape = 'u32[]', space=smem, size = 0x4, offset = 0x4, fixed_abs, tag = 'smem constant byte address 0x4 - core index']
  #allocation1 [shape = 'u32[144,128]{1,0:T(1,128)}', space=vmem, size = 0x12000, scoped, tag = 'internal scratch']
  #allocation2 [shape = 'f32[1,1]{1,0:T(1,128)S(6)}', space=smem, size = 0x200, scoped, tag = 'scoped memory for tpu_custom_call.1']
  %s0 = inlined_call_operand.hbm [shape: f32[384,512], index: 0, kind: input, shape index: {}]
  %s1 = inlined_call_operand.hbm [shape: bf16[512,256], index: 1, kind: input, shape index: {}]
  %s2 = inlined_call_operand.vmem [shape: f32[1,256], index: 2, kind: input, shape index: {}]
  %s3 = inlined_call_operand.vmem [shape: f32[1,256], index: 3, kind: input, shape index: {}]
  %s4 = inlined_call_operand.<no memory space> [shape: f32[1,1], index: 4, kind: input, shape index: {}]
  %s5 = inlined_call_operand.vmem [shape: f32[384,1], index: 5, kind: output, shape index: {}]
  %s6 = sld [smem:[#allocation0]]
  $region38: #{tpu_custom_call.1} parent=0
    _
  %s8 = ssub.s32 1, %s6
  %s9 = scalar_select 0, %s8, %s6
  %10 = sst [smem:[#allocation2]] %s4
  $region1: #{tpu_custom_call.1} parent=0
    #allocation3 [shape = 'u8[786432]{0}', space=vmem, size = 0xc0000, scoped, tag = 'input window, operand 0, single buffered']
    #allocation4 [shape = 's32[1]{0}', space=sflag, size = 0x4, scoped, tag = 'scoped memory for tpu_custom_call.1']
    #allocation5 [shape = 'u8[262144]{0}', space=vmem, size = 0x40000, scoped, tag = 'input window, operand 1, single buffered']
    #allocation6 [shape = 's32[1]{0}', space=sflag, size = 0x4, scoped, tag = 'scoped memory for tpu_custom_call.1']
    %11 = vsyncpa [#allocation4], 0
    %12 = vsyncpa [#allocation6], 0
    // Predicated region
    $region2: #{tpu_custom_call.1} parent=1 // pred_check
      _
    $region3: #{tpu_custom_call.1} parent=1 // pred_check_branch
      %14 = sbr.rel (0) target = $region5
    $region4: #{tpu_custom_call.1} parent=1 // pred_region
      %s16 = ssub.s32 24576, 24576
      %17 = vsyncadd [#allocation4], %s16
      %s18 = sshll.u32 [#allocation3], 4
      %s19 = int_to_ptr.vmem [resolvable:$true] %s18
      %24 = dma.hbm_to_vmem [thread:$0]  %s0, 24576, %s19, [#allocation4], 512, 512, 32
    $region5: #{tpu_custom_call.1} parent=1 // pred_fallthru
      _
    // Predicated region
    $region6: #{tpu_custom_call.1} parent=1 // pred_check
      _
    $region7: #{tpu_custom_call.1} parent=1 // pred_check_branch
      %26 = sbr.rel (0) target = $region9
    $region8: #{tpu_custom_call.1} parent=1 // pred_region
      %s28 = ssub.s32 8192, 8192
      %29 = vsyncadd [#allocation6], %s28
      %s30 = sshll.u32 [#allocation5], 4
      %s31 = int_to_ptr.vmem [resolvable:$true] %s30
      %36 = dma.hbm_to_vmem [thread:$0]  %s1, 8192, %s31, [#allocation6], 128, 128, 8
    $region9: #{tpu_custom_call.1} parent=1 // pred_fallthru
      _
    // Predicated region
    $region10: #{tpu_custom_call.1} parent=1 // pred_check
      _
    $region11: #{tpu_custom_call.1} parent=1 // pred_check_branch
      %38 = sbr.rel (0) target = $region13
    $region12: #{tpu_custom_call.1} parent=1 // pred_region
      _
    $region13: #{tpu_custom_call.1} parent=1 // pred_fallthru
      _
    // Predicated region
    $region14: #{tpu_custom_call.1} parent=1 // pred_check
      _
    $region15: #{tpu_custom_call.1} parent=1 // pred_check_branch
      %40 = sbr.rel (0) target = $region17
    $region16: #{tpu_custom_call.1} parent=1 // pred_region
      _
    $region17: #{tpu_custom_call.1} parent=1 // pred_fallthru
      _
    // Predicated region
    $region18: #{tpu_custom_call.1} parent=1 // pred_check
      _
    $region19: #{tpu_custom_call.1} parent=1 // pred_check_branch
      %42 = sbr.rel (0) target = $region21
    $region20: #{tpu_custom_call.1} parent=1 // pred_region
      _
    $region21: #{tpu_custom_call.1} parent=1 // pred_fallthru
      _
    // Predicated region
    $region22: #{tpu_custom_call.1} parent=1 // pred_check
      _
    $region23: #{tpu_custom_call.1} parent=1 // pred_check_branch
      %44 = sbr.rel (0) target = $region25
    $region24: #{tpu_custom_call.1} parent=1 // pred_region
      %45 = dma.done [#allocation4], 24576
    $region25: #{tpu_custom_call.1} parent=1 // pred_fallthru
      _
    // Predicated region
    $region26: #{tpu_custom_call.1} parent=1 // pred_check
      _
    $region27: #{tpu_custom_call.1} parent=1 // pred_check_branch
      %47 = sbr.rel (0) target = $region29
    $region28: #{tpu_custom_call.1} parent=1 // pred_region
      %48 = dma.done [#allocation6], 8192
    $region29: #{tpu_custom_call.1} parent=1 // pred_fallthru
      _
    %v49 = vld [vmem:[#allocation3] sm:$0xff]
    %v50 = vld [vmem:[#allocation3 + $0x8] sm:$0xff]
    %v51 = vld [vmem:[#allocation3 + $0x10] sm:$0xff]
    %v52 = vld [vmem:[#allocation3 + $0x18] sm:$0xff]
    %v53 = vld [vmem:[#allocation3 + $0x20] sm:$0xff]
    %v54 = vld [vmem:[#allocation3 + $0x28] sm:$0xff]
    %v55 = vld [vmem:[#allocation3 + $0x30] sm:$0xff]
    %v56 = vld [vmem:[#allocation3 + $0x38] sm:$0xff]
    %v57 = vld [vmem:[#allocation3 + $0x40] sm:$0xff]
    %v58 = vld [vmem:[#allocation3 + $0x48] sm:$0xff]
    %v59 = vld [vmem:[#allocation3 + $0x50] sm:$0xff]
    %v60 = vld [vmem:[#allocation3 + $0x58] sm:$0xff]
    %v61 = vld [vmem:[#allocation3 + $0x60] sm:$0xff]
    %v62 = vld [vmem:[#allocation3 + $0x68] sm:$0xff]
    %v63 = vld [vmem:[#allocation3 + $0x70] sm:$0xff]
    %v64 = vld [vmem:[#allocation3 + $0x78] sm:$0xff]
    %v65 = vld [vmem:[#allocation3 + $0x80] sm:$0xff]
    %v66 = vld [vmem:[#allocation3 + $0x88] sm:$0xff]
    %v67 = vld [vmem:[#allocation3 + $0x90] sm:$0xff]
    %v68 = vld [vmem:[#allocation3 + $0x98] sm:$0xff]
    %v69 = vld [vmem:[#allocation3 + $0xa0] sm:$0xff]
    %v70 = vld [vmem:[#allocation3 + $0xa8] sm:$0xff]
    %v71 = vld [vmem:[#allocation3 + $0xb0] sm:$0xff]
    %v72 = vld [vmem:[#allocation3 + $0xb8] sm:$0xff]
    %v73 = vld [vmem:[#allocation3 + $0xc0] sm:$0xff]
    %v74 = vld [vmem:[#allocation3 + $0xc8] sm:$0xff]
    %v75 = vld [vmem:[#allocation3 + $0xd0] sm:$0xff]
    %v76 = vld [vmem:[#allocation3 + $0xd8] sm:$0xff]
    %v77 = vld [vmem:[#allocation3 + $0xe0] sm:$0xff]
    %v78 = vld [vmem:[#allocation3 + $0xe8] sm:$0xff]
    %v79 = vld [vmem:[#allocation3 + $0xf0] sm:$0xff]
    %v80 = vld [vmem:[#allocation3 + $0xf8] sm:$0xff]
    %v81 = vld [vmem:[#allocation3 + $0x100] sm:$0xff]
    %v82 = vld [vmem:[#allocation3 + $0x108] sm:$0xff]
    %v83 = vld [vmem:[#allocation3 + $0x110] sm:$0xff]
    %v84 = vld [vmem:[#allocation3 + $0x118] sm:$0xff]
    %v85 = vld [vmem:[#allocation3 + $0x120] sm:$0xff]
    %v86 = vld [vmem:[#allocation3 + $0x128] sm:$0xff]
    %v87 = vld [vmem:[#allocation3 + $0x130] sm:$0xff]
    %v88 = vld [vmem:[#allocation3 + $0x138] sm:$0xff]
    %v89 = vld [vmem:[#allocation3 + $0x140] sm:$0xff]
    %v90 = vld [vmem:[#allocation3 + $0x148] sm:$0xff]
    %v91 = vld [vmem:[#allocation3 + $0x150] sm:$0xff]
    %v92 = vld [vmem:[#allocation3 + $0x158] sm:$0xff]
    %v93 = vld [vmem:[#allocation3 + $0x160] sm:$0xff]
    %v94 = vld [vmem:[#allocation3 + $0x168] sm:$0xff]
    %v95 = vld [vmem:[#allocation3 + $0x170] sm:$0xff]
    %v96 = vld [vmem:[#allocation3 + $0x178] sm:$0xff]
    %v97 = vld [vmem:[#allocation3 + $0x180] sm:$0xff]
    %v98 = vld [vmem:[#allocation3 + $0x188] sm:$0xff]
    %v99 = vld [vmem:[#allocation3 + $0x190] sm:$0xff]
    %v100 = vld [vmem:[#allocation3 + $0x198] sm:$0xff]
    %v101 = vld [vmem:[#allocation3 + $0x1a0] sm:$0xff]
    %v102 = vld [vmem:[#allocation3 + $0x1a8] sm:$0xff]
    %v103 = vld [vmem:[#allocation3 + $0x1b0] sm:$0xff]
    %v104 = vld [vmem:[#allocation3 + $0x1b8] sm:$0xff]
    %v105 = vld [vmem:[#allocation3 + $0x1c0] sm:$0xff]
    %v106 = vld [vmem:[#allocation3 + $0x1c8] sm:$0xff]
    %v107 = vld [vmem:[#allocation3 + $0x1d0] sm:$0xff]
    %v108 = vld [vmem:[#allocation3 + $0x1d8] sm:$0xff]
    %v109 = vld [vmem:[#allocation3 + $0x1e0] sm:$0xff]
    %v110 = vld [vmem:[#allocation3 + $0x1e8] sm:$0xff]
    %v111 = vld [vmem:[#allocation3 + $0x1f0] sm:$0xff]
    %v112 = vld [vmem:[#allocation3 + $0x1f8] sm:$0xff]
    %v113 = vld [vmem:[#allocation3 + $0x200] sm:$0xff]
    %v114 = vld [vmem:[#allocation3 + $0x208] sm:$0xff]
    %v115 = vld [vmem:[#allocation3 + $0x210] sm:$0xff]
    %v116 = vld [vmem:[#allocation3 + $0x218] sm:$0xff]
    %v117 = vld [vmem:[#allocation3 + $0x220] sm:$0xff]
    %v118 = vld [vmem:[#allocation3 + $0x228] sm:$0xff]
    %v119 = vld [vmem:[#allocation3 + $0x230] sm:$0xff]
    %v120 = vld [vmem:[#allocation3 + $0x238] sm:$0xff]
    %v121 = vld [vmem:[#allocation3 + $0x240] sm:$0xff]
    %v122 = vld [vmem:[#allocation3 + $0x248] sm:$0xff]
    %v123 = vld [vmem:[#allocation3 + $0x250] sm:$0xff]
    %v124 = vld [vmem:[#allocation3 + $0x258] sm:$0xff]
    %v125 = vld [vmem:[#allocation3 + $0x260] sm:$0xff]
    %v126 = vld [vmem:[#allocation3 + $0x268] sm:$0xff]
    %v127 = vld [vmem:[#allocation3 + $0x270] sm:$0xff]
    %v128 = vld [vmem:[#allocation3 + $0x278] sm:$0xff]
    %v129 = vld [vmem:[#allocation3 + $0x280] sm:$0xff]
    %v130 = vld [vmem:[#allocation3 + $0x288] sm:$0xff]
    %v131 = vld [vmem:[#allocation3 + $0x290] sm:$0xff]
    %v132 = vld [vmem:[#allocation3 + $0x298] sm:$0xff]
    %v133 = vld [vmem:[#allocation3 + $0x2a0] sm:$0xff]
    %v134 = vld [vmem:[#allocation3 + $0x2a8] sm:$0xff]
    %v135 = vld [vmem:[#allocation3 + $0x2b0] sm:$0xff]
    %v136 = vld [vmem:[#allocation3 + $0x2b8] sm:$0xff]
    %v137 = vld [vmem:[#allocation3 + $0x2c0] sm:$0xff]
    %v138 = vld [vmem:[#allocation3 + $0x2c8] sm:$0xff]
    %v139 = vld [vmem:[#allocation3 + $0x2d0] sm:$0xff]
    %v140 = vld [vmem:[#allocation3 + $0x2d8] sm:$0xff]
    %v141 = vld [vmem:[#allocation3 + $0x2e0] sm:$0xff]
    %v142 = vld [vmem:[#allocation3 + $0x2e8] sm:$0xff]
    %v143 = vld [vmem:[#allocation3 + $0x2f0] sm:$0xff]
    %v144 = vld [vmem:[#allocation3 + $0x2f8] sm:$0xff]
    %v145 = vld [vmem:[#allocation3 + $0x300] sm:$0xff]
    %v146 = vld [vmem:[#allocation3 + $0x308] sm:$0xff]
    %v147 = vld [vmem:[#allocation3 + $0x310] sm:$0xff]
    %v148 = vld [vmem:[#allocation3 + $0x318] sm:$0xff]
    %v149 = vld [vmem:[#allocation3 + $0x320] sm:$0xff]
    %v150 = vld [vmem:[#allocation3 + $0x328] sm:$0xff]
    %v151 = vld [vmem:[#allocation3 + $0x330] sm:$0xff]
    %v152 = vld [vmem:[#allocation3 + $0x338] sm:$0xff]
    %v153 = vld [vmem:[#allocation3 + $0x340] sm:$0xff]
    %v154 = vld [vmem:[#allocation3 + $0x348] sm:$0xff]
    %v155 = vld [vmem:[#allocation3 + $0x350] sm:$0xff]
    %v156 = vld [vmem:[#allocation3 + $0x358] sm:$0xff]
    %v157 = vld [vmem:[#allocation3 + $0x360] sm:$0xff]
    %v158 = vld [vmem:[#allocation3 + $0x368] sm:$0xff]
    %v159 = vld [vmem:[#allocation3 + $0x370] sm:$0xff]
    %v160 = vld [vmem:[#allocation3 + $0x378] sm:$0xff]
    %v161 = vld [vmem:[#allocation3 + $0x380] sm:$0xff]
    %v162 = vld [vmem:[#allocation3 + $0x388] sm:$0xff]
    %v163 = vld [vmem:[#allocation3 + $0x390] sm:$0xff]
    %v164 = vld [vmem:[#allocation3 + $0x398] sm:$0xff]
    %v165 = vld [vmem:[#allocation3 + $0x3a0] sm:$0xff]
    %v166 = vld [vmem:[#allocation3 + $0x3a8] sm:$0xff]
    %v167 = vld [vmem:[#allocation3 + $0x3b0] sm:$0xff]
    %v168 = vld [vmem:[#allocation3 + $0x3b8] sm:$0xff]
    %v169 = vld [vmem:[#allocation3 + $0x3c0] sm:$0xff]
    %v170 = vld [vmem:[#allocation3 + $0x3c8] sm:$0xff]
    %v171 = vld [vmem:[#allocation3 + $0x3d0] sm:$0xff]
    %v172 = vld [vmem:[#allocation3 + $0x3d8] sm:$0xff]
    %v173 = vld [vmem:[#allocation3 + $0x3e0] sm:$0xff]
    %v174 = vld [vmem:[#allocation3 + $0x3e8] sm:$0xff]
    %v175 = vld [vmem:[#allocation3 + $0x3f0] sm:$0xff]
    %v176 = vld [vmem:[#allocation3 + $0x3f8] sm:$0xff]
    %v177 = vld [vmem:[#allocation3 + $0x400] sm:$0xff]
    %v178 = vld [vmem:[#allocation3 + $0x408] sm:$0xff]
    %v179 = vld [vmem:[#allocation3 + $0x410] sm:$0xff]
    %v180 = vld [vmem:[#allocation3 + $0x418] sm:$0xff]
    %v181 = vld [vmem:[#allocation3 + $0x420] sm:$0xff]
    %v182 = vld [vmem:[#allocation3 + $0x428] sm:$0xff]
    %v183 = vld [vmem:[#allocation3 + $0x430] sm:$0xff]
    %v184 = vld [vmem:[#allocation3 + $0x438] sm:$0xff]
    %v185 = vld [vmem:[#allocation3 + $0x440] sm:$0xff]
    %v186 = vld [vmem:[#allocation3 + $0x448] sm:$0xff]
    %v187 = vld [vmem:[#allocation3 + $0x450] sm:$0xff]
    %v188 = vld [vmem:[#allocation3 + $0x458] sm:$0xff]
    %v189 = vld [vmem:[#allocation3 + $0x460] sm:$0xff]
    %v190 = vld [vmem:[#allocation3 + $0x468] sm:$0xff]
    %v191 = vld [vmem:[#allocation3 + $0x470] sm:$0xff]
    %v192 = vld [vmem:[#allocation3 + $0x478] sm:$0xff]
    %v193 = vld [vmem:[#allocation3 + $0x480] sm:$0xff]
    %v194 = vld [vmem:[#allocation3 + $0x488] sm:$0xff]
    %v195 = vld [vmem:[#allocation3 + $0x490] sm:$0xff]
    %v196 = vld [vmem:[#allocation3 + $0x498] sm:$0xff]
    %v197 = vld [vmem:[#allocation3 + $0x4a0] sm:$0xff]
    %v198 = vld [vmem:[#allocation3 + $0x4a8] sm:$0xff]
    %v199 = vld [vmem:[#allocation3 + $0x4b0] sm:$0xff]
    %v200 = vld [vmem:[#allocation3 + $0x4b8] sm:$0xff]
    %v201 = vld [vmem:[#allocation3 + $0x4c0] sm:$0xff]
    %v202 = vld [vmem:[#allocation3 + $0x4c8] sm:$0xff]
    %v203 = vld [vmem:[#allocation3 + $0x4d0] sm:$0xff]
    %v204 = vld [vmem:[#allocation3 + $0x4d8] sm:$0xff]
    %v205 = vld [vmem:[#allocation3 + $0x4e0] sm:$0xff]
    %v206 = vld [vmem:[#allocation3 + $0x4e8] sm:$0xff]
    %v207 = vld [vmem:[#allocation3 + $0x4f0] sm:$0xff]
    %v208 = vld [vmem:[#allocation3 + $0x4f8] sm:$0xff]
    %v209 = vld [vmem:[#allocation3 + $0x500] sm:$0xff]
    %v210 = vld [vmem:[#allocation3 + $0x508] sm:$0xff]
    %v211 = vld [vmem:[#allocation3 + $0x510] sm:$0xff]
    %v212 = vld [vmem:[#allocation3 + $0x518] sm:$0xff]
    %v213 = vld [vmem:[#allocation3 + $0x520] sm:$0xff]
    %v214 = vld [vmem:[#allocation3 + $0x528] sm:$0xff]
    %v215 = vld [vmem:[#allocation3 + $0x530] sm:$0xff]
    %v216 = vld [vmem:[#allocation3 + $0x538] sm:$0xff]
    %v217 = vld [vmem:[#allocation3 + $0x540] sm:$0xff]
    %v218 = vld [vmem:[#allocation3 + $0x548] sm:$0xff]
    %v219 = vld [vmem:[#allocation3 + $0x550] sm:$0xff]
    %v220 = vld [vmem:[#allocation3 + $0x558] sm:$0xff]
    %v221 = vld [vmem:[#allocation3 + $0x560] sm:$0xff]
    %v222 = vld [vmem:[#allocation3 + $0x568] sm:$0xff]
    %v223 = vld [vmem:[#allocation3 + $0x570] sm:$0xff]
    %v224 = vld [vmem:[#allocation3 + $0x578] sm:$0xff]
    %v225 = vld [vmem:[#allocation3 + $0x580] sm:$0xff]
    %v226 = vld [vmem:[#allocation3 + $0x588] sm:$0xff]
    %v227 = vld [vmem:[#allocation3 + $0x590] sm:$0xff]
    %v228 = vld [vmem:[#allocation3 + $0x598] sm:$0xff]
    %v229 = vld [vmem:[#allocation3 + $0x5a0] sm:$0xff]
    %v230 = vld [vmem:[#allocation3 + $0x5a8] sm:$0xff]
    %v231 = vld [vmem:[#allocation3 + $0x5b0] sm:$0xff]
    %v232 = vld [vmem:[#allocation3 + $0x5b8] sm:$0xff]
    %v233 = vld [vmem:[#allocation3 + $0x5c0] sm:$0xff]
    %v234 = vld [vmem:[#allocation3 + $0x5c8] sm:$0xff]
    %v235 = vld [vmem:[#allocation3 + $0x5d0] sm:$0xff]
    %v236 = vld [vmem:[#allocation3 + $0x5d8] sm:$0xff]
    %v237 = vld [vmem:[#allocation3 + $0x5e0] sm:$0xff]
    %v238 = vld [vmem:[#allocation3 + $0x5e8] sm:$0xff]
    %v239 = vld [vmem:[#allocation3 + $0x5f0] sm:$0xff]
    %v240 = vld [vmem:[#allocation3 + $0x5f8] sm:$0xff]
    %v241 = vpack.c.bf16 %v53, %v49
    %v242 = vpack.c.bf16 %v54, %v50
    %v243 = vpack.c.bf16 %v55, %v51
    %v244 = vpack.c.bf16 %v56, %v52
    %v245 = vpack.c.bf16 %v61, %v57
    %v246 = vpack.c.bf16 %v62, %v58
    %v247 = vpack.c.bf16 %v63, %v59
    %v248 = vpack.c.bf16 %v64, %v60
    %v249 = vpack.c.bf16 %v69, %v65
    %v250 = vpack.c.bf16 %v70, %v66
    %v251 = vpack.c.bf16 %v71, %v67
    %v252 = vpack.c.bf16 %v72, %v68
    %v253 = vpack.c.bf16 %v77, %v73
    %v254 = vpack.c.bf16 %v78, %v74
    %v255 = vpack.c.bf16 %v79, %v75
    %v256 = vpack.c.bf16 %v80, %v76
    %v257 = vpack.c.bf16 %v85, %v81
    %v258 = vpack.c.bf16 %v86, %v82
    %v259 = vpack.c.bf16 %v87, %v83
    %v260 = vpack.c.bf16 %v88, %v84
    %v261 = vpack.c.bf16 %v93, %v89
    %v262 = vpack.c.bf16 %v94, %v90
    %v263 = vpack.c.bf16 %v95, %v91
    %v264 = vpack.c.bf16 %v96, %v92
    %v265 = vpack.c.bf16 %v101, %v97
    %v266 = vpack.c.bf16 %v102, %v98
    %v267 = vpack.c.bf16 %v103, %v99
    %v268 = vpack.c.bf16 %v104, %v100
    %v269 = vpack.c.bf16 %v109, %v105
    %v270 = vpack.c.bf16 %v110, %v106
    %v271 = vpack.c.bf16 %v111, %v107
    %v272 = vpack.c.bf16 %v112, %v108
    %v273 = vpack.c.bf16 %v117, %v113
    %v274 = vpack.c.bf16 %v118, %v114
    %v275 = vpack.c.bf16 %v119, %v115
    %v276 = vpack.c.bf16 %v120, %v116
    %v277 = vpack.c.bf16 %v125, %v121
    %v278 = vpack.c.bf16 %v126, %v122
    %v279 = vpack.c.bf16 %v127, %v123
    %v280 = vpack.c.bf16 %v128, %v124
    %v281 = vpack.c.bf16 %v133, %v129
    %v282 = vpack.c.bf16 %v134, %v130
    %v283 = vpack.c.bf16 %v135, %v131
    %v284 = vpack.c.bf16 %v136, %v132
    %v285 = vpack.c.bf16 %v141, %v137
    %v286 = vpack.c.bf16 %v142, %v138
    %v287 = vpack.c.bf16 %v143, %v139
    %v288 = vpack.c.bf16 %v144, %v140
    %v289 = vpack.c.bf16 %v149, %v145
    %v290 = vpack.c.bf16 %v150, %v146
    %v291 = vpack.c.bf16 %v151, %v147
    %v292 = vpack.c.bf16 %v152, %v148
    %v293 = vpack.c.bf16 %v157, %v153
    %v294 = vpack.c.bf16 %v158, %v154
    %v295 = vpack.c.bf16 %v159, %v155
    %v296 = vpack.c.bf16 %v160, %v156
    %v297 = vpack.c.bf16 %v165, %v161
    %v298 = vpack.c.bf16 %v166, %v162
    %v299 = vpack.c.bf16 %v167, %v163
    %v300 = vpack.c.bf16 %v168, %v164
    %v301 = vpack.c.bf16 %v173, %v169
    %v302 = vpack.c.bf16 %v174, %v170
    %v303 = vpack.c.bf16 %v175, %v171
    %v304 = vpack.c.bf16 %v176, %v172
    %v305 = vpack.c.bf16 %v181, %v177
    %v306 = vpack.c.bf16 %v182, %v178
    %v307 = vpack.c.bf16 %v183, %v179
    %v308 = vpack.c.bf16 %v184, %v180
    %v309 = vpack.c.bf16 %v189, %v185
    %v310 = vpack.c.bf16 %v190, %v186
    %v311 = vpack.c.bf16 %v191, %v187
    %v312 = vpack.c.bf16 %v192, %v188
    %v313 = vpack.c.bf16 %v197, %v193
    %v314 = vpack.c.bf16 %v198, %v194
    %v315 = vpack.c.bf16 %v199, %v195
    %v316 = vpack.c.bf16 %v200, %v196
    %v317 = vpack.c.bf16 %v205, %v201
    %v318 = vpack.c.bf16 %v206, %v202
    %v319 = vpack.c.bf16 %v207, %v203
    %v320 = vpack.c.bf16 %v208, %v204
    %v321 = vpack.c.bf16 %v213, %v209
    %v322 = vpack.c.bf16 %v214, %v210
    %v323 = vpack.c.bf16 %v215, %v211
    %v324 = vpack.c.bf16 %v216, %v212
    %v325 = vpack.c.bf16 %v221, %v217
    %v326 = vpack.c.bf16 %v222, %v218
    %v327 = vpack.c.bf16 %v223, %v219
    %v328 = vpack.c.bf16 %v224, %v220
    %v329 = vpack.c.bf16 %v229, %v225
    %v330 = vpack.c.bf16 %v230, %v226
    %v331 = vpack.c.bf16 %v231, %v227
    %v332 = vpack.c.bf16 %v232, %v228
    %v333 = vpack.c.bf16 %v237, %v233
    %v334 = vpack.c.bf16 %v238, %v234
    %v335 = vpack.c.bf16 %v239, %v235
    %v336 = vpack.c.bf16 %v240, %v236
    %v337 = vld [vmem:[#allocation5] sm:$0xff]
    %v338 = vld [vmem:[#allocation5 + $0x8] sm:$0xff]
    %v339 = vld [vmem:[#allocation5 + $0x10] sm:$0xff]
    %v340 = vld [vmem:[#allocation5 + $0x18] sm:$0xff]
    %v341 = vld [vmem:[#allocation5 + $0x20] sm:$0xff]
    %v342 = vld [vmem:[#allocation5 + $0x28] sm:$0xff]
    %v343 = vld [vmem:[#allocation5 + $0x30] sm:$0xff]
    %v344 = vld [vmem:[#allocation5 + $0x38] sm:$0xff]
    %v345 = vld [vmem:[#allocation5 + $0x40] sm:$0xff]
    %v346 = vld [vmem:[#allocation5 + $0x48] sm:$0xff]
    %v347 = vld [vmem:[#allocation5 + $0x50] sm:$0xff]
    %v348 = vld [vmem:[#allocation5 + $0x58] sm:$0xff]
    %v349 = vld [vmem:[#allocation5 + $0x60] sm:$0xff]
    %v350 = vld [vmem:[#allocation5 + $0x68] sm:$0xff]
    %v351 = vld [vmem:[#allocation5 + $0x70] sm:$0xff]
    %v352 = vld [vmem:[#allocation5 + $0x78] sm:$0xff]
    %v353 = vld [vmem:[#allocation5 + $0x80] sm:$0xff]
    %v354 = vld [vmem:[#allocation5 + $0x88] sm:$0xff]
    %v355 = vld [vmem:[#allocation5 + $0x90] sm:$0xff]
    %v356 = vld [vmem:[#allocation5 + $0x98] sm:$0xff]
    %v357 = vld [vmem:[#allocation5 + $0xa0] sm:$0xff]
    %v358 = vld [vmem:[#allocation5 + $0xa8] sm:$0xff]
    %v359 = vld [vmem:[#allocation5 + $0xb0] sm:$0xff]
    %v360 = vld [vmem:[#allocation5 + $0xb8] sm:$0xff]
    %v361 = vld [vmem:[#allocation5 + $0xc0] sm:$0xff]
    %v362 = vld [vmem:[#allocation5 + $0xc8] sm:$0xff]
    %v363 = vld [vmem:[#allocation5 + $0xd0] sm:$0xff]
    %v364 = vld [vmem:[#allocation5 + $0xd8] sm:$0xff]
    %v365 = vld [vmem:[#allocation5 + $0xe0] sm:$0xff]
    %v366 = vld [vmem:[#allocation5 + $0xe8] sm:$0xff]
    %v367 = vld [vmem:[#allocation5 + $0xf0] sm:$0xff]
    %v368 = vld [vmem:[#allocation5 + $0xf8] sm:$0xff]
    %v369 = vld [vmem:[#allocation5 + $0x100] sm:$0xff]
    %v370 = vld [vmem:[#allocation5 + $0x108] sm:$0xff]
    %v371 = vld [vmem:[#allocation5 + $0x110] sm:$0xff]
    %v372 = vld [vmem:[#allocation5 + $0x118] sm:$0xff]
    %v373 = vld [vmem:[#allocation5 + $0x120] sm:$0xff]
    %v374 = vld [vmem:[#allocation5 + $0x128] sm:$0xff]
    %v375 = vld [vmem:[#allocation5 + $0x130] sm:$0xff]
    %v376 = vld [vmem:[#allocation5 + $0x138] sm:$0xff]
    %v377 = vld [vmem:[#allocation5 + $0x140] sm:$0xff]
    %v378 = vld [vmem:[#allocation5 + $0x148] sm:$0xff]
    %v379 = vld [vmem:[#allocation5 + $0x150] sm:$0xff]
    %v380 = vld [vmem:[#allocation5 + $0x158] sm:$0xff]
    %v381 = vld [vmem:[#allocation5 + $0x160] sm:$0xff]
    %v382 = vld [vmem:[#allocation5 + $0x168] sm:$0xff]
    %v383 = vld [vmem:[#allocation5 + $0x170] sm:$0xff]
    %v384 = vld [vmem:[#allocation5 + $0x178] sm:$0xff]
    %v385 = vld [vmem:[#allocation5 + $0x180] sm:$0xff]
    %v386 = vld [vmem:[#allocation5 + $0x188] sm:$0xff]
    %v387 = vld [vmem:[#allocation5 + $0x190] sm:$0xff]
    %v388 = vld [vmem:[#allocation5 + $0x198] sm:$0xff]
    %v389 = vld [vmem:[#allocation5 + $0x1a0] sm:$0xff]
    %v390 = vld [vmem:[#allocation5 + $0x1a8] sm:$0xff]
    %v391 = vld [vmem:[#allocation5 + $0x1b0] sm:$0xff]
    %v392 = vld [vmem:[#allocation5 + $0x1b8] sm:$0xff]
    %v393 = vld [vmem:[#allocation5 + $0x1c0] sm:$0xff]
    %v394 = vld [vmem:[#allocation5 + $0x1c8] sm:$0xff]
    %v395 = vld [vmem:[#allocation5 + $0x1d0] sm:$0xff]
    %v396 = vld [vmem:[#allocation5 + $0x1d8] sm:$0xff]
    %v397 = vld [vmem:[#allocation5 + $0x1e0] sm:$0xff]
    %v398 = vld [vmem:[#allocation5 + $0x1e8] sm:$0xff]
    %v399 = vld [vmem:[#allocation5 + $0x1f0] sm:$0xff]
    %v400 = vld [vmem:[#allocation5 + $0x1f8] sm:$0xff]
    %v401 = vld [vmem:[%s2] sm:$0x3]
    %v403 = vlaneseq
    %v404 = vshrl.u32 %v403, 7
    %v405 = vsub.s32 0, %v404
    %v406 = vrot.slane %v401, %v405
    %v407 = vlaneseq
    %v408 = vshrl.u32 %v407, 7
    %v409 = vsub.s32 1, %v408
    %v410 = vrot.slane %v401, %v409
    %v477 = vunpack.c.l.b16 %v337
    %v478 = vunpack.c.h.b16 %v337
    %v479 = vunpack.c.l.b16 %v338
    %v480 = vunpack.c.h.b16 %v338
    %v481 = vunpack.c.l.b16 %v339
    %v482 = vunpack.c.h.b16 %v339
    %v483 = vunpack.c.l.b16 %v340
    %v484 = vunpack.c.h.b16 %v340
    %v485 = vunpack.c.l.b16 %v341
    %v486 = vunpack.c.h.b16 %v341
    %v487 = vunpack.c.l.b16 %v342
    %v488 = vunpack.c.h.b16 %v342
    %v489 = vunpack.c.l.b16 %v343
    %v490 = vunpack.c.h.b16 %v343
    %v491 = vunpack.c.l.b16 %v344
    %v492 = vunpack.c.h.b16 %v344
    %v493 = vunpack.c.l.b16 %v345
    %v494 = vunpack.c.h.b16 %v345
    %v495 = vunpack.c.l.b16 %v346
    %v496 = vunpack.c.h.b16 %v346
    %v497 = vunpack.c.l.b16 %v347
    %v498 = vunpack.c.h.b16 %v347
    %v499 = vunpack.c.l.b16 %v348
    %v500 = vunpack.c.h.b16 %v348
    %v501 = vunpack.c.l.b16 %v349
    %v502 = vunpack.c.h.b16 %v349
    %v503 = vunpack.c.l.b16 %v350
    %v504 = vunpack.c.h.b16 %v350
    %v505 = vunpack.c.l.b16 %v351
    %v506 = vunpack.c.h.b16 %v351
    %v507 = vunpack.c.l.b16 %v352
    %v508 = vunpack.c.h.b16 %v352
    %v509 = vunpack.c.l.b16 %v353
    %v510 = vunpack.c.h.b16 %v353
    %v511 = vunpack.c.l.b16 %v354
    %v512 = vunpack.c.h.b16 %v354
    %v513 = vunpack.c.l.b16 %v355
    %v514 = vunpack.c.h.b16 %v355
    %v515 = vunpack.c.l.b16 %v356
    %v516 = vunpack.c.h.b16 %v356
    %v517 = vunpack.c.l.b16 %v357
    %v518 = vunpack.c.h.b16 %v357
    %v519 = vunpack.c.l.b16 %v358
    %v520 = vunpack.c.h.b16 %v358
    %v521 = vunpack.c.l.b16 %v359
    %v522 = vunpack.c.h.b16 %v359
    %v523 = vunpack.c.l.b16 %v360
    %v524 = vunpack.c.h.b16 %v360
    %v525 = vunpack.c.l.b16 %v361
    %v526 = vunpack.c.h.b16 %v361
    %v527 = vunpack.c.l.b16 %v362
    %v528 = vunpack.c.h.b16 %v362
    %v529 = vunpack.c.l.b16 %v363
    %v530 = vunpack.c.h.b16 %v363
    %v531 = vunpack.c.l.b16 %v364
    %v532 = vunpack.c.h.b16 %v364
    %v533 = vunpack.c.l.b16 %v365
    %v534 = vunpack.c.h.b16 %v365
    %v535 = vunpack.c.l.b16 %v366
    %v536 = vunpack.c.h.b16 %v366
    %v537 = vunpack.c.l.b16 %v367
    %v538 = vunpack.c.h.b16 %v367
    %v539 = vunpack.c.l.b16 %v368
    %v540 = vunpack.c.h.b16 %v368
    %v541 = vunpack.c.l.b16 %v369
    %v542 = vunpack.c.h.b16 %v369
    %v543 = vunpack.c.l.b16 %v370
    %v544 = vunpack.c.h.b16 %v370
    %v545 = vunpack.c.l.b16 %v371
    %v546 = vunpack.c.h.b16 %v371
    %v547 = vunpack.c.l.b16 %v372
    %v548 = vunpack.c.h.b16 %v372
    %v549 = vunpack.c.l.b16 %v373
    %v550 = vunpack.c.h.b16 %v373
    %v551 = vunpack.c.l.b16 %v374
    %v552 = vunpack.c.h.b16 %v374
    %v553 = vunpack.c.l.b16 %v375
    %v554 = vunpack.c.h.b16 %v375
    %v555 = vunpack.c.l.b16 %v376
    %v556 = vunpack.c.h.b16 %v376
    %v557 = vunpack.c.l.b16 %v377
    %v558 = vunpack.c.h.b16 %v377
    %v559 = vunpack.c.l.b16 %v378
    %v560 = vunpack.c.h.b16 %v378
    %v561 = vunpack.c.l.b16 %v379
    %v562 = vunpack.c.h.b16 %v379
    %v563 = vunpack.c.l.b16 %v380
    %v564 = vunpack.c.h.b16 %v380
    %v565 = vunpack.c.l.b16 %v381
    %v566 = vunpack.c.h.b16 %v381
    %v567 = vunpack.c.l.b16 %v382
    %v568 = vunpack.c.h.b16 %v382
    %v569 = vunpack.c.l.b16 %v383
    %v570 = vunpack.c.h.b16 %v383
    %v571 = vunpack.c.l.b16 %v384
    %v572 = vunpack.c.h.b16 %v384
    %v573 = vunpack.c.l.b16 %v385
    %v574 = vunpack.c.h.b16 %v385
    %v575 = vunpack.c.l.b16 %v386
    %v576 = vunpack.c.h.b16 %v386
    %v577 = vunpack.c.l.b16 %v387
    %v578 = vunpack.c.h.b16 %v387
    %v579 = vunpack.c.l.b16 %v388
    %v580 = vunpack.c.h.b16 %v388
    %v581 = vunpack.c.l.b16 %v389
    %v582 = vunpack.c.h.b16 %v389
    %v583 = vunpack.c.l.b16 %v390
    %v584 = vunpack.c.h.b16 %v390
    %v585 = vunpack.c.l.b16 %v391
    %v586 = vunpack.c.h.b16 %v391
    %v587 = vunpack.c.l.b16 %v392
    %v588 = vunpack.c.h.b16 %v392
    %v589 = vunpack.c.l.b16 %v393
    %v590 = vunpack.c.h.b16 %v393
    %v591 = vunpack.c.l.b16 %v394
    %v592 = vunpack.c.h.b16 %v394
    %v593 = vunpack.c.l.b16 %v395
    %v594 = vunpack.c.h.b16 %v395
    %v595 = vunpack.c.l.b16 %v396
    %v596 = vunpack.c.h.b16 %v396
    %v597 = vunpack.c.l.b16 %v397
    %v598 = vunpack.c.h.b16 %v397
    %v599 = vunpack.c.l.b16 %v398
    %v600 = vunpack.c.h.b16 %v398
    %v601 = vunpack.c.l.b16 %v399
    %v602 = vunpack.c.h.b16 %v399
    %v603 = vunpack.c.l.b16 %v400
    %v604 = vunpack.c.h.b16 %v400
    %v605 = vpack.c.b16 %v479, %v477
    %v606 = vpack.c.b16 %v480, %v478
    %v607 = vpack.c.b16 %v483, %v481
    %v608 = vpack.c.b16 %v484, %v482
    %v609 = vpack.c.b16 %v487, %v485
    %v610 = vpack.c.b16 %v488, %v486
    %v611 = vpack.c.b16 %v491, %v489
    %v612 = vpack.c.b16 %v492, %v490
    %v613 = vpack.c.b16 %v495, %v493
    %v614 = vpack.c.b16 %v496, %v494
    %v615 = vpack.c.b16 %v499, %v497
    %v616 = vpack.c.b16 %v500, %v498
    %v617 = vpack.c.b16 %v503, %v501
    %v618 = vpack.c.b16 %v504, %v502
    %v619 = vpack.c.b16 %v507, %v505
    %v620 = vpack.c.b16 %v508, %v506
    %v621 = vpack.c.b16 %v511, %v509
    %v622 = vpack.c.b16 %v512, %v510
    %v623 = vpack.c.b16 %v515, %v513
    %v624 = vpack.c.b16 %v516, %v514
    %v625 = vpack.c.b16 %v519, %v517
    %v626 = vpack.c.b16 %v520, %v518
    %v627 = vpack.c.b16 %v523, %v521
    %v628 = vpack.c.b16 %v524, %v522
    %v629 = vpack.c.b16 %v527, %v525
    %v630 = vpack.c.b16 %v528, %v526
    %v631 = vpack.c.b16 %v531, %v529
    %v632 = vpack.c.b16 %v532, %v530
    %v633 = vpack.c.b16 %v535, %v533
    %v634 = vpack.c.b16 %v536, %v534
    %v635 = vpack.c.b16 %v539, %v537
    %v636 = vpack.c.b16 %v540, %v538
    %v637 = vpack.c.b16 %v543, %v541
    %v638 = vpack.c.b16 %v544, %v542
    %v639 = vpack.c.b16 %v547, %v545
    %v640 = vpack.c.b16 %v548, %v546
    %v641 = vpack.c.b16 %v551, %v549
    %v642 = vpack.c.b16 %v552, %v550
    %v643 = vpack.c.b16 %v555, %v553
    %v644 = vpack.c.b16 %v556, %v554
    %v645 = vpack.c.b16 %v559, %v557
    %v646 = vpack.c.b16 %v560, %v558
    %v647 = vpack.c.b16 %v563, %v561
    %v648 = vpack.c.b16 %v564, %v562
    %v649 = vpack.c.b16 %v567, %v565
    %v650 = vpack.c.b16 %v568, %v566
    %v651 = vpack.c.b16 %v571, %v569
    %v652 = vpack.c.b16 %v572, %v570
    %v653 = vpack.c.b16 %v575, %v573
    %v654 = vpack.c.b16 %v576, %v574
    %v655 = vpack.c.b16 %v579, %v577
    %v656 = vpack.c.b16 %v580, %v578
    %v657 = vpack.c.b16 %v583, %v581
    %v658 = vpack.c.b16 %v584, %v582
    %v659 = vpack.c.b16 %v587, %v585
    %v660 = vpack.c.b16 %v588, %v586
    %v661 = vpack.c.b16 %v591, %v589
    %v662 = vpack.c.b16 %v592, %v590
    %v663 = vpack.c.b16 %v595, %v593
    %v664 = vpack.c.b16 %v596, %v594
    %v665 = vpack.c.b16 %v599, %v597
    %v666 = vpack.c.b16 %v600, %v598
    %v667 = vpack.c.b16 %v603, %v601
    %v668 = vpack.c.b16 %v604, %v602
    %733 = vmatprep.subr.bf16.mxu0 %v620
    %734 = vmatpush1.bf16.msra.mxu0 %v619
    %735 = vmatprep.subr.bf16.mxu0 %v618
    %736 = vmatpush1.bf16.msra.mxu0 %v617
    %737 = vmatprep.subr.bf16.mxu0 %v616
    %738 = vmatpush1.bf16.msra.mxu0 %v615
    %739 = vmatprep.subr.bf16.mxu0 %v614
    %740 = vmatpush1.bf16.msra.mxu0 %v613
    %741 = vmatprep.subr.bf16.mxu0 %v612
    %742 = vmatpush1.bf16.msra.mxu0 %v611
    %743 = vmatprep.subr.bf16.mxu0 %v610
    %744 = vmatpush1.bf16.msra.mxu0 %v609
    %745 = vmatprep.subr.bf16.mxu0 %v608
    %746 = vmatpush1.bf16.msra.mxu0 %v607
    %747 = vmatprep.subr.bf16.mxu0 %v606
    %748 = vmatpush1.bf16.msra.mxu0 %v605
    %749 = vmatprep.subr.bf16.mxu0 %v636
    %750 = vmatpush2.bf16.msra.mxu0 %v635
    %751 = vmatprep.subr.bf16.mxu0 %v634
    %752 = vmatpush2.bf16.msra.mxu0 %v633
    %753 = vmatprep.subr.bf16.mxu0 %v632
    %754 = vmatpush2.bf16.msra.mxu0 %v631
    %755 = vmatprep.subr.bf16.mxu0 %v630
    %756 = vmatpush2.bf16.msra.mxu0 %v629
    %757 = vmatprep.subr.bf16.mxu0 %v628
    %758 = vmatpush2.bf16.msra.mxu0 %v627
    %759 = vmatprep.subr.bf16.mxu0 %v626
    %760 = vmatpush2.bf16.msra.mxu0 %v625
    %761 = vmatprep.subr.bf16.mxu0 %v624
    %762 = vmatpush2.bf16.msra.mxu0 %v623
    %763 = vmatprep.subr.bf16.mxu0 %v622
    %764 = vmatpush2.bf16.msra.mxu0 %v621
    %765 = vmatprep.mubr.bf16.mxu0 %v242
    %766 = vmatmul.mubr.bf16.gmra.mxu0 %v241
    %v767 = vpop.f32.mrf.mxu0
    %v768 = vadd.f32 %v406, %v767
    %v769 = vpop.f32.mrf.mxu0
    %v770 = vadd.f32 %v410, %v769
    %v771 = vpop.f32.mrf.mxu0
    %v772 = vadd.f32 %v406, %v771
    %v773 = vpop.f32.mrf.mxu0
    %v774 = vadd.f32 %v410, %v773
    %775 = vmatprep.mubr.bf16.mxu0 %v246
    %776 = vmatmul.mubr.bf16.gmra.mxu0 %v245
    %v777 = vpop.f32.mrf.mxu0
    %v778 = vadd.f32 %v406, %v777
    %v779 = vpop.f32.mrf.mxu0
    %v780 = vadd.f32 %v410, %v779
    %v781 = vpop.f32.mrf.mxu0
    %v782 = vadd.f32 %v406, %v781
    %v783 = vpop.f32.mrf.mxu0
    %v784 = vadd.f32 %v410, %v783
    %785 = vmatprep.mubr.bf16.mxu0 %v250
    %786 = vmatmul.mubr.bf16.gmra.mxu0 %v249
    %v787 = vpop.f32.mrf.mxu0
    %v788 = vadd.f32 %v406, %v787
    %v789 = vpop.f32.mrf.mxu0
    %v790 = vadd.f32 %v410, %v789
    %v791 = vpop.f32.mrf.mxu0
    %v792 = vadd.f32 %v406, %v791
    %v793 = vpop.f32.mrf.mxu0
    %v794 = vadd.f32 %v410, %v793
    %795 = vmatprep.mubr.bf16.mxu0 %v254
    %796 = vmatmul.mubr.bf16.gmra.mxu0 %v253
    %v797 = vpop.f32.mrf.mxu0
    %v798 = vadd.f32 %v406, %v797
    %v799 = vpop.f32.mrf.mxu0
    %v800 = vadd.f32 %v410, %v799
    %v801 = vpop.f32.mrf.mxu0
    %v802 = vadd.f32 %v406, %v801
    %v803 = vpop.f32.mrf.mxu0
    %v804 = vadd.f32 %v410, %v803
    %805 = vmatprep.mubr.bf16.mxu0 %v258
    %806 = vmatmul.mubr.bf16.gmra.mxu0 %v257
    %v807 = vpop.f32.mrf.mxu0
    %v808 = vadd.f32 %v406, %v807
    %v809 = vpop.f32.mrf.mxu0
    %v810 = vadd.f32 %v410, %v809
    %v811 = vpop.f32.mrf.mxu0
    %v812 = vadd.f32 %v406, %v811
    %v813 = vpop.f32.mrf.mxu0
    %v814 = vadd.f32 %v410, %v813
    %815 = vmatprep.mubr.bf16.mxu0 %v262
    %816 = vmatmul.mubr.bf16.gmra.mxu0 %v261
    %v817 = vpop.f32.mrf.mxu0
    %v818 = vadd.f32 %v406, %v817
    %v819 = vpop.f32.mrf.mxu0
    %v820 = vadd.f32 %v410, %v819
    %v821 = vpop.f32.mrf.mxu0
    %v822 = vadd.f32 %v406, %v821
    %v823 = vpop.f32.mrf.mxu0
    %v824 = vadd.f32 %v410, %v823
    %825 = vmatprep.mubr.bf16.mxu0 %v266
    %826 = vmatmul.mubr.bf16.gmra.mxu0 %v265
    %v827 = vpop.f32.mrf.mxu0
    %v828 = vadd.f32 %v406, %v827
    %v829 = vpop.f32.mrf.mxu0
    %v830 = vadd.f32 %v410, %v829
    %v831 = vpop.f32.mrf.mxu0
    %v832 = vadd.f32 %v406, %v831
    %v833 = vpop.f32.mrf.mxu0
    %v834 = vadd.f32 %v410, %v833
    %835 = vmatprep.mubr.bf16.mxu0 %v270
    %836 = vmatmul.mubr.bf16.gmra.mxu0 %v269
    %v837 = vpop.f32.mrf.mxu0
    %v838 = vadd.f32 %v406, %v837
    %v839 = vpop.f32.mrf.mxu0
    %v840 = vadd.f32 %v410, %v839
    %v841 = vpop.f32.mrf.mxu0
    %v842 = vadd.f32 %v406, %v841
    %v843 = vpop.f32.mrf.mxu0
    %v844 = vadd.f32 %v410, %v843
    %845 = vmatprep.mubr.bf16.mxu0 %v274
    %846 = vmatmul.mubr.bf16.gmra.mxu0 %v273
    %v847 = vpop.f32.mrf.mxu0
    %v848 = vadd.f32 %v406, %v847
    %v849 = vpop.f32.mrf.mxu0
    %v850 = vadd.f32 %v410, %v849
    %v851 = vpop.f32.mrf.mxu0
    %v852 = vadd.f32 %v406, %v851
    %v853 = vpop.f32.mrf.mxu0
    %v854 = vadd.f32 %v410, %v853
    %855 = vmatprep.mubr.bf16.mxu0 %v278
    %856 = vmatmul.mubr.bf16.gmra.mxu0 %v277
    %v857 = vpop.f32.mrf.mxu0
    %v858 = vadd.f32 %v406, %v857
    %v859 = vpop.f32.mrf.mxu0
    %v860 = vadd.f32 %v410, %v859
    %v861 = vpop.f32.mrf.mxu0
    %v862 = vadd.f32 %v406, %v861
    %v863 = vpop.f32.mrf.mxu0
    %v864 = vadd.f32 %v410, %v863
    %865 = vmatprep.mubr.bf16.mxu0 %v282
    %866 = vmatmul.mubr.bf16.gmra.mxu0 %v281
    %v867 = vpop.f32.mrf.mxu0
    %v868 = vadd.f32 %v406, %v867
    %v869 = vpop.f32.mrf.mxu0
    %v870 = vadd.f32 %v410, %v869
    %v871 = vpop.f32.mrf.mxu0
    %v872 = vadd.f32 %v406, %v871
    %v873 = vpop.f32.mrf.mxu0
    %v874 = vadd.f32 %v410, %v873
    %875 = vmatprep.mubr.bf16.mxu0 %v286
    %876 = vmatmul.mubr.bf16.gmra.mxu0 %v285
    %v877 = vpop.f32.mrf.mxu0
    %v878 = vadd.f32 %v406, %v877
    %v879 = vpop.f32.mrf.mxu0
    %v880 = vadd.f32 %v410, %v879
    %v881 = vpop.f32.mrf.mxu0
    %v882 = vadd.f32 %v406, %v881
    %v883 = vpop.f32.mrf.mxu0
    %v884 = vadd.f32 %v410, %v883
    %885 = vmatprep.mubr.bf16.mxu0 %v290
    %886 = vmatmul.mubr.bf16.gmra.mxu0 %v289
    %v887 = vpop.f32.mrf.mxu0
    %v888 = vadd.f32 %v406, %v887
    %v889 = vpop.f32.mrf.mxu0
    %v890 = vadd.f32 %v410, %v889
    %v891 = vpop.f32.mrf.mxu0
    %v892 = vadd.f32 %v406, %v891
    %v893 = vpop.f32.mrf.mxu0
    %v894 = vadd.f32 %v410, %v893
    %895 = vmatprep.mubr.bf16.mxu0 %v294
    %896 = vmatmul.mubr.bf16.gmra.mxu0 %v293
    %v897 = vpop.f32.mrf.mxu0
    %v898 = vadd.f32 %v406, %v897
    %v899 = vpop.f32.mrf.mxu0
    %v900 = vadd.f32 %v410, %v899
    %v901 = vpop.f32.mrf.mxu0
    %v902 = vadd.f32 %v406, %v901
    %v903 = vpop.f32.mrf.mxu0
    %v904 = vadd.f32 %v410, %v903
    %905 = vmatprep.mubr.bf16.mxu0 %v298
    %906 = vmatmul.mubr.bf16.gmra.mxu0 %v297
    %v907 = vpop.f32.mrf.mxu0
    %v908 = vadd.f32 %v406, %v907
    %v909 = vpop.f32.mrf.mxu0
    %v910 = vadd.f32 %v410, %v909
    %v911 = vpop.f32.mrf.mxu0
    %v912 = vadd.f32 %v406, %v911
    %v913 = vpop.f32.mrf.mxu0
    %v914 = vadd.f32 %v410, %v913
    %915 = vmatprep.mubr.bf16.mxu0 %v302
    %916 = vmatmul.mubr.bf16.gmra.mxu0 %v301
    %v917 = vpop.f32.mrf.mxu0
    %v918 = vadd.f32 %v406, %v917
    %v919 = vpop.f32.mrf.mxu0
    %v920 = vadd.f32 %v410, %v919
    %v921 = vpop.f32.mrf.mxu0
    %v922 = vadd.f32 %v406, %v921
    %v923 = vpop.f32.mrf.mxu0
    %v924 = vadd.f32 %v410, %v923
    %925 = vmatprep.mubr.bf16.mxu0 %v306
    %926 = vmatmul.mubr.bf16.gmra.mxu0 %v305
    %v927 = vpop.f32.mrf.mxu0
    %v928 = vadd.f32 %v406, %v927
    %v929 = vpop.f32.mrf.mxu0
    %v930 = vadd.f32 %v410, %v929
    %v931 = vpop.f32.mrf.mxu0
    %v932 = vadd.f32 %v406, %v931
    %v933 = vpop.f32.mrf.mxu0
    %v934 = vadd.f32 %v410, %v933
    %935 = vmatprep.mubr.bf16.mxu0 %v310
    %936 = vmatmul.mubr.bf16.gmra.mxu0 %v309
    %v937 = vpop.f32.mrf.mxu0
    %v938 = vadd.f32 %v406, %v937
    %v939 = vpop.f32.mrf.mxu0
    %v940 = vadd.f32 %v410, %v939
    %v941 = vpop.f32.mrf.mxu0
    %v942 = vadd.f32 %v406, %v941
    %v943 = vpop.f32.mrf.mxu0
    %v944 = vadd.f32 %v410, %v943
    %945 = vmatprep.mubr.bf16.mxu0 %v314
    %946 = vmatmul.mubr.bf16.gmra.mxu0 %v313
    %v947 = vpop.f32.mrf.mxu0
    %v948 = vadd.f32 %v406, %v947
    %v949 = vpop.f32.mrf.mxu0
    %v950 = vadd.f32 %v410, %v949
    %v951 = vpop.f32.mrf.mxu0
    %v952 = vadd.f32 %v406, %v951
    %v953 = vpop.f32.mrf.mxu0
    %v954 = vadd.f32 %v410, %v953
    %955 = vmatprep.mubr.bf16.mxu0 %v318
    %956 = vmatmul.mubr.bf16.gmra.mxu0 %v317
    %v957 = vpop.f32.mrf.mxu0
    %v958 = vadd.f32 %v406, %v957
    %v959 = vpop.f32.mrf.mxu0
    %v960 = vadd.f32 %v410, %v959
    %v961 = vpop.f32.mrf.mxu0
    %v962 = vadd.f32 %v406, %v961
    %v963 = vpop.f32.mrf.mxu0
    %v964 = vadd.f32 %v410, %v963
    %965 = vmatprep.mubr.bf16.mxu0 %v322
    %966 = vmatmul.mubr.bf16.gmra.mxu0 %v321
    %v967 = vpop.f32.mrf.mxu0
    %v968 = vadd.f32 %v406, %v967
    %v969 = vpop.f32.mrf.mxu0
    %v970 = vadd.f32 %v410, %v969
    %v971 = vpop.f32.mrf.mxu0
    %v972 = vadd.f32 %v406, %v971
    %v973 = vpop.f32.mrf.mxu0
    %v974 = vadd.f32 %v410, %v973
    %975 = vmatprep.mubr.bf16.mxu0 %v326
    %976 = vmatmul.mubr.bf16.gmra.mxu0 %v325
    %v977 = vpop.f32.mrf.mxu0
    %v978 = vadd.f32 %v406, %v977
    %v979 = vpop.f32.mrf.mxu0
    %v980 = vadd.f32 %v410, %v979
    %v981 = vpop.f32.mrf.mxu0
    %v982 = vadd.f32 %v406, %v981
    %v983 = vpop.f32.mrf.mxu0
    %v984 = vadd.f32 %v410, %v983
    %985 = vmatprep.mubr.bf16.mxu0 %v330
    %986 = vmatmul.mubr.bf16.gmra.mxu0 %v329
    %v987 = vpop.f32.mrf.mxu0
    %v988 = vadd.f32 %v406, %v987
    %v989 = vpop.f32.mrf.mxu0
    %v990 = vadd.f32 %v410, %v989
    %v991 = vpop.f32.mrf.mxu0
    %v992 = vadd.f32 %v406, %v991
    %v993 = vpop.f32.mrf.mxu0
    %v994 = vadd.f32 %v410, %v993
    %995 = vmatprep.mubr.bf16.mxu0 %v334
    %996 = vmatmul.mubr.bf16.gmra.mxu0 %v333
    %v997 = vpop.f32.mrf.mxu0
    %v998 = vadd.f32 %v406, %v997
    %v999 = vpop.f32.mrf.mxu0
    %v1000 = vadd.f32 %v410, %v999
    %v1001 = vpop.f32.mrf.mxu0
    %v1002 = vadd.f32 %v406, %v1001
    %v1003 = vpop.f32.mrf.mxu0
    %v1004 = vadd.f32 %v410, %v1003
    %1005 = vdwg.mxu0
    %1006 = vmatprep.subr.bf16.mxu0 %v652
    %1007 = vmatpush1.bf16.msra.mxu0 %v651
    %1008 = vmatprep.subr.bf16.mxu0 %v650
    %1009 = vmatpush1.bf16.msra.mxu0 %v649
    %1010 = vmatprep.subr.bf16.mxu0 %v648
    %1011 = vmatpush1.bf16.msra.mxu0 %v647
    %1012 = vmatprep.subr.bf16.mxu0 %v646
    %1013 = vmatpush1.bf16.msra.mxu0 %v645
    %1014 = vmatprep.subr.bf16.mxu0 %v644
    %1015 = vmatpush1.bf16.msra.mxu0 %v643
    %1016 = vmatprep.subr.bf16.mxu0 %v642
    %1017 = vmatpush1.bf16.msra.mxu0 %v641
    %1018 = vmatprep.subr.bf16.mxu0 %v640
    %1019 = vmatpush1.bf16.msra.mxu0 %v639
    %1020 = vmatprep.subr.bf16.mxu0 %v638
    %1021 = vmatpush1.bf16.msra.mxu0 %v637
    %1022 = vmatprep.subr.bf16.mxu0 %v668
    %1023 = vmatpush2.bf16.msra.mxu0 %v667
    %1024 = vmatprep.subr.bf16.mxu0 %v666
    %1025 = vmatpush2.bf16.msra.mxu0 %v665
    %1026 = vmatprep.subr.bf16.mxu0 %v664
    %1027 = vmatpush2.bf16.msra.mxu0 %v663
    %1028 = vmatprep.subr.bf16.mxu0 %v662
    %1029 = vmatpush2.bf16.msra.mxu0 %v661
    %1030 = vmatprep.subr.bf16.mxu0 %v660
    %1031 = vmatpush2.bf16.msra.mxu0 %v659
    %1032 = vmatprep.subr.bf16.mxu0 %v658
    %1033 = vmatpush2.bf16.msra.mxu0 %v657
    %1034 = vmatprep.subr.bf16.mxu0 %v656
    %1035 = vmatpush2.bf16.msra.mxu0 %v655
    %1036 = vmatprep.subr.bf16.mxu0 %v654
    %1037 = vmatpush2.bf16.msra.mxu0 %v653
    %1038 = vmatprep.mubr.bf16.mxu0 %v244
    %1039 = vmatmul.mubr.bf16.gmra.mxu0 %v243
    %v1040 = vpop.f32.mrf.mxu0
    %v1041 = vadd.f32 %v768, %v1040
    %v1042 = vpop.f32.mrf.mxu0
    %v1043 = vadd.f32 %v770, %v1042
    %v1044 = vpop.f32.mrf.mxu0
    %v1045 = vadd.f32 %v772, %v1044
    %v1046 = vpop.f32.mrf.mxu0
    %v1047 = vadd.f32 %v774, %v1046
    %1048 = vmatprep.mubr.bf16.mxu0 %v248
    %1049 = vmatmul.mubr.bf16.gmra.mxu0 %v247
    %v1050 = vpop.f32.mrf.mxu0
    %v1051 = vadd.f32 %v778, %v1050
    %v1052 = vpop.f32.mrf.mxu0
    %v1053 = vadd.f32 %v780, %v1052
    %v1054 = vpop.f32.mrf.mxu0
    %v1055 = vadd.f32 %v782, %v1054
    %v1056 = vpop.f32.mrf.mxu0
    %v1057 = vadd.f32 %v784, %v1056
    %1058 = vmatprep.mubr.bf16.mxu0 %v252
    %1059 = vmatmul.mubr.bf16.gmra.mxu0 %v251
    %v1060 = vpop.f32.mrf.mxu0
    %v1061 = vadd.f32 %v788, %v1060
    %v1062 = vpop.f32.mrf.mxu0
    %v1063 = vadd.f32 %v790, %v1062
    %v1064 = vpop.f32.mrf.mxu0
    %v1065 = vadd.f32 %v792, %v1064
    %v1066 = vpop.f32.mrf.mxu0
    %v1067 = vadd.f32 %v794, %v1066
    %1068 = vmatprep.mubr.bf16.mxu0 %v256
    %1069 = vmatmul.mubr.bf16.gmra.mxu0 %v255
    %v1070 = vpop.f32.mrf.mxu0
    %v1071 = vadd.f32 %v798, %v1070
    %v1072 = vpop.f32.mrf.mxu0
    %v1073 = vadd.f32 %v800, %v1072
    %v1074 = vpop.f32.mrf.mxu0
    %v1075 = vadd.f32 %v802, %v1074
    %v1076 = vpop.f32.mrf.mxu0
    %v1077 = vadd.f32 %v804, %v1076
    %1078 = vmatprep.mubr.bf16.mxu0 %v260
    %1079 = vmatmul.mubr.bf16.gmra.mxu0 %v259
    %v1080 = vpop.f32.mrf.mxu0
    %v1081 = vadd.f32 %v808, %v1080
    %v1082 = vpop.f32.mrf.mxu0
    %v1083 = vadd.f32 %v810, %v1082
    %v1084 = vpop.f32.mrf.mxu0
    %v1085 = vadd.f32 %v812, %v1084
    %v1086 = vpop.f32.mrf.mxu0
    %v1087 = vadd.f32 %v814, %v1086
    %1088 = vmatprep.mubr.bf16.mxu0 %v264
    %1089 = vmatmul.mubr.bf16.gmra.mxu0 %v263
    %v1090 = vpop.f32.mrf.mxu0
    %v1091 = vadd.f32 %v818, %v1090
    %v1092 = vpop.f32.mrf.mxu0
    %v1093 = vadd.f32 %v820, %v1092
    %v1094 = vpop.f32.mrf.mxu0
    %v1095 = vadd.f32 %v822, %v1094
    %v1096 = vpop.f32.mrf.mxu0
    %v1097 = vadd.f32 %v824, %v1096
    %1098 = vmatprep.mubr.bf16.mxu0 %v268
    %1099 = vmatmul.mubr.bf16.gmra.mxu0 %v267
    %v1100 = vpop.f32.mrf.mxu0
    %v1101 = vadd.f32 %v828, %v1100
    %v1102 = vpop.f32.mrf.mxu0
    %v1103 = vadd.f32 %v830, %v1102
    %v1104 = vpop.f32.mrf.mxu0
    %v1105 = vadd.f32 %v832, %v1104
    %v1106 = vpop.f32.mrf.mxu0
    %v1107 = vadd.f32 %v834, %v1106
    %1108 = vmatprep.mubr.bf16.mxu0 %v272
    %1109 = vmatmul.mubr.bf16.gmra.mxu0 %v271
    %v1110 = vpop.f32.mrf.mxu0
    %v1111 = vadd.f32 %v838, %v1110
    %v1112 = vpop.f32.mrf.mxu0
    %v1113 = vadd.f32 %v840, %v1112
    %v1114 = vpop.f32.mrf.mxu0
    %v1115 = vadd.f32 %v842, %v1114
    %v1116 = vpop.f32.mrf.mxu0
    %v1117 = vadd.f32 %v844, %v1116
    %1118 = vmatprep.mubr.bf16.mxu0 %v276
    %1119 = vmatmul.mubr.bf16.gmra.mxu0 %v275
    %v1120 = vpop.f32.mrf.mxu0
    %v1121 = vadd.f32 %v848, %v1120
    %v1122 = vpop.f32.mrf.mxu0
    %v1123 = vadd.f32 %v850, %v1122
    %v1124 = vpop.f32.mrf.mxu0
    %v1125 = vadd.f32 %v852, %v1124
    %v1126 = vpop.f32.mrf.mxu0
    %v1127 = vadd.f32 %v854, %v1126
    %1128 = vmatprep.mubr.bf16.mxu0 %v280
    %1129 = vmatmul.mubr.bf16.gmra.mxu0 %v279
    %v1130 = vpop.f32.mrf.mxu0
    %v1131 = vadd.f32 %v858, %v1130
    %v1132 = vpop.f32.mrf.mxu0
    %v1133 = vadd.f32 %v860, %v1132
    %v1134 = vpop.f32.mrf.mxu0
    %v1135 = vadd.f32 %v862, %v1134
    %v1136 = vpop.f32.mrf.mxu0
    %v1137 = vadd.f32 %v864, %v1136
    %1138 = vmatprep.mubr.bf16.mxu0 %v284
    %1139 = vmatmul.mubr.bf16.gmra.mxu0 %v283
    %v1140 = vpop.f32.mrf.mxu0
    %v1141 = vadd.f32 %v868, %v1140
    %v1142 = vpop.f32.mrf.mxu0
    %v1143 = vadd.f32 %v870, %v1142
    %v1144 = vpop.f32.mrf.mxu0
    %v1145 = vadd.f32 %v872, %v1144
    %v1146 = vpop.f32.mrf.mxu0
    %v1147 = vadd.f32 %v874, %v1146
    %1148 = vmatprep.mubr.bf16.mxu0 %v288
    %1149 = vmatmul.mubr.bf16.gmra.mxu0 %v287
    %v1150 = vpop.f32.mrf.mxu0
    %v1151 = vadd.f32 %v878, %v1150
    %v1152 = vpop.f32.mrf.mxu0
    %v1153 = vadd.f32 %v880, %v1152
    %v1154 = vpop.f32.mrf.mxu0
    %v1155 = vadd.f32 %v882, %v1154
    %v1156 = vpop.f32.mrf.mxu0
    %v1157 = vadd.f32 %v884, %v1156
    %1158 = vmatprep.mubr.bf16.mxu0 %v292
    %1159 = vmatmul.mubr.bf16.gmra.mxu0 %v291
    %v1160 = vpop.f32.mrf.mxu0
    %v1161 = vadd.f32 %v888, %v1160
    %v1162 = vpop.f32.mrf.mxu0
    %v1163 = vadd.f32 %v890, %v1162
    %v1164 = vpop.f32.mrf.mxu0
    %v1165 = vadd.f32 %v892, %v1164
    %v1166 = vpop.f32.mrf.mxu0
    %v1167 = vadd.f32 %v894, %v1166
    %1168 = vmatprep.mubr.bf16.mxu0 %v296
    %1169 = vmatmul.mubr.bf16.gmra.mxu0 %v295
    %v1170 = vpop.f32.mrf.mxu0
    %v1171 = vadd.f32 %v898, %v1170
    %v1172 = vpop.f32.mrf.mxu0
    %v1173 = vadd.f32 %v900, %v1172
    %v1174 = vpop.f32.mrf.mxu0
    %v1175 = vadd.f32 %v902, %v1174
    %v1176 = vpop.f32.mrf.mxu0
    %v1177 = vadd.f32 %v904, %v1176
    %1178 = vmatprep.mubr.bf16.mxu0 %v300
    %1179 = vmatmul.mubr.bf16.gmra.mxu0 %v299
    %v1180 = vpop.f32.mrf.mxu0
    %v1181 = vadd.f32 %v908, %v1180
    %v1182 = vpop.f32.mrf.mxu0
    %v1183 = vadd.f32 %v910, %v1182
    %v1184 = vpop.f32.mrf.mxu0
    %v1185 = vadd.f32 %v912, %v1184
    %v1186 = vpop.f32.mrf.mxu0
    %v1187 = vadd.f32 %v914, %v1186
    %1188 = vmatprep.mubr.bf16.mxu0 %v304
    %1189 = vmatmul.mubr.bf16.gmra.mxu0 %v303
    %v1190 = vpop.f32.mrf.mxu0
    %v1191 = vadd.f32 %v918, %v1190
    %v1192 = vpop.f32.mrf.mxu0
    %v1193 = vadd.f32 %v920, %v1192
    %v1194 = vpop.f32.mrf.mxu0
    %v1195 = vadd.f32 %v922, %v1194
    %v1196 = vpop.f32.mrf.mxu0
    %v1197 = vadd.f32 %v924, %v1196
    %1198 = vmatprep.mubr.bf16.mxu0 %v308
    %1199 = vmatmul.mubr.bf16.gmra.mxu0 %v307
    %v1200 = vpop.f32.mrf.mxu0
    %v1201 = vadd.f32 %v928, %v1200
    %v1202 = vpop.f32.mrf.mxu0
    %v1203 = vadd.f32 %v930, %v1202
    %v1204 = vpop.f32.mrf.mxu0
    %v1205 = vadd.f32 %v932, %v1204
    %v1206 = vpop.f32.mrf.mxu0
    %v1207 = vadd.f32 %v934, %v1206
    %1208 = vmatprep.mubr.bf16.mxu0 %v312
    %1209 = vmatmul.mubr.bf16.gmra.mxu0 %v311
    %v1210 = vpop.f32.mrf.mxu0
    %v1211 = vadd.f32 %v938, %v1210
    %v1212 = vpop.f32.mrf.mxu0
    %v1213 = vadd.f32 %v940, %v1212
    %v1214 = vpop.f32.mrf.mxu0
    %v1215 = vadd.f32 %v942, %v1214
    %v1216 = vpop.f32.mrf.mxu0
    %v1217 = vadd.f32 %v944, %v1216
    %1218 = vmatprep.mubr.bf16.mxu0 %v316
    %1219 = vmatmul.mubr.bf16.gmra.mxu0 %v315
    %v1220 = vpop.f32.mrf.mxu0
    %v1221 = vadd.f32 %v948, %v1220
    %v1222 = vpop.f32.mrf.mxu0
    %v1223 = vadd.f32 %v950, %v1222
    %v1224 = vpop.f32.mrf.mxu0
    %v1225 = vadd.f32 %v952, %v1224
    %v1226 = vpop.f32.mrf.mxu0
    %v1227 = vadd.f32 %v954, %v1226
    %1228 = vmatprep.mubr.bf16.mxu0 %v320
    %1229 = vmatmul.mubr.bf16.gmra.mxu0 %v319
    %v1230 = vpop.f32.mrf.mxu0
    %v1231 = vadd.f32 %v958, %v1230
    %v1232 = vpop.f32.mrf.mxu0
    %v1233 = vadd.f32 %v960, %v1232
    %v1234 = vpop.f32.mrf.mxu0
    %v1235 = vadd.f32 %v962, %v1234
    %v1236 = vpop.f32.mrf.mxu0
    %v1237 = vadd.f32 %v964, %v1236
    %1238 = vmatprep.mubr.bf16.mxu0 %v324
    %1239 = vmatmul.mubr.bf16.gmra.mxu0 %v323
    %v1240 = vpop.f32.mrf.mxu0
    %v1241 = vadd.f32 %v968, %v1240
    %v1242 = vpop.f32.mrf.mxu0
    %v1243 = vadd.f32 %v970, %v1242
    %v1244 = vpop.f32.mrf.mxu0
    %v1245 = vadd.f32 %v972, %v1244
    %v1246 = vpop.f32.mrf.mxu0
    %v1247 = vadd.f32 %v974, %v1246
    %1248 = vmatprep.mubr.bf16.mxu0 %v328
    %1249 = vmatmul.mubr.bf16.gmra.mxu0 %v327
    %v1250 = vpop.f32.mrf.mxu0
    %v1251 = vadd.f32 %v978, %v1250
    %v1252 = vpop.f32.mrf.mxu0
    %v1253 = vadd.f32 %v980, %v1252
    %v1254 = vpop.f32.mrf.mxu0
    %v1255 = vadd.f32 %v982, %v1254
    %v1256 = vpop.f32.mrf.mxu0
    %v1257 = vadd.f32 %v984, %v1256
    %1258 = vmatprep.mubr.bf16.mxu0 %v332
    %1259 = vmatmul.mubr.bf16.gmra.mxu0 %v331
    %v1260 = vpop.f32.mrf.mxu0
    %v1261 = vadd.f32 %v988, %v1260
    %v1262 = vpop.f32.mrf.mxu0
    %v1263 = vadd.f32 %v990, %v1262
    %v1264 = vpop.f32.mrf.mxu0
    %v1265 = vadd.f32 %v992, %v1264
    %v1266 = vpop.f32.mrf.mxu0
    %v1267 = vadd.f32 %v994, %v1266
    %1268 = vmatprep.mubr.bf16.mxu0 %v336
    %1269 = vmatmul.mubr.bf16.gmra.mxu0 %v335
    %v1270 = vpop.f32.mrf.mxu0
    %v1271 = vadd.f32 %v998, %v1270
    %v1272 = vpop.f32.mrf.mxu0
    %v1273 = vadd.f32 %v1000, %v1272
    %v1274 = vpop.f32.mrf.mxu0
    %v1275 = vadd.f32 %v1002, %v1274
    %v1276 = vpop.f32.mrf.mxu0
    %v1277 = vadd.f32 %v1004, %v1276
    %1278 = vdwg.mxu0
    %v1279 = vmax.f32 %v1041, 0.0
    %v1280 = vmax.f32 %v1043, 0.0
    %v1281 = vmax.f32 %v1045, 0.0
    %v1282 = vmax.f32 %v1047, 0.0
    %v1283 = vmax.f32 %v1051, 0.0
    %v1284 = vmax.f32 %v1053, 0.0
    %v1285 = vmax.f32 %v1055, 0.0
    %v1286 = vmax.f32 %v1057, 0.0
    %v1287 = vmax.f32 %v1061, 0.0
    %v1288 = vmax.f32 %v1063, 0.0
    %v1289 = vmax.f32 %v1065, 0.0
    %v1290 = vmax.f32 %v1067, 0.0
    %v1291 = vmax.f32 %v1071, 0.0
    %v1292 = vmax.f32 %v1073, 0.0
    %v1293 = vmax.f32 %v1075, 0.0
    %v1294 = vmax.f32 %v1077, 0.0
    %v1295 = vmax.f32 %v1081, 0.0
    %v1296 = vmax.f32 %v1083, 0.0
    %v1297 = vmax.f32 %v1085, 0.0
    %v1298 = vmax.f32 %v1087, 0.0
    %v1299 = vmax.f32 %v1091, 0.0
    %v1300 = vmax.f32 %v1093, 0.0
    %v1301 = vmax.f32 %v1095, 0.0
    %v1302 = vmax.f32 %v1097, 0.0
    %v1303 = vmax.f32 %v1101, 0.0
    %v1304 = vmax.f32 %v1103, 0.0
    %v1305 = vmax.f32 %v1105, 0.0
    %v1306 = vmax.f32 %v1107, 0.0
    %v1307 = vmax.f32 %v1111, 0.0
    %v1308 = vmax.f32 %v1113, 0.0
    %v1309 = vmax.f32 %v1115, 0.0
    %v1310 = vmax.f32 %v1117, 0.0
    %v1311 = vmax.f32 %v1121, 0.0
    %v1312 = vmax.f32 %v1123, 0.0
    %v1313 = vmax.f32 %v1125, 0.0
    %v1314 = vmax.f32 %v1127, 0.0
    %v1315 = vmax.f32 %v1131, 0.0
    %v1316 = vmax.f32 %v1133, 0.0
    %v1317 = vmax.f32 %v1135, 0.0
    %v1318 = vmax.f32 %v1137, 0.0
    %v1319 = vmax.f32 %v1141, 0.0
    %v1320 = vmax.f32 %v1143, 0.0
    %v1321 = vmax.f32 %v1145, 0.0
    %v1322 = vmax.f32 %v1147, 0.0
    %v1323 = vmax.f32 %v1151, 0.0
    %v1324 = vmax.f32 %v1153, 0.0
    %v1325 = vmax.f32 %v1155, 0.0
    %v1326 = vmax.f32 %v1157, 0.0
    %v1327 = vmax.f32 %v1161, 0.0
    %v1328 = vmax.f32 %v1163, 0.0
    %v1329 = vmax.f32 %v1165, 0.0
    %v1330 = vmax.f32 %v1167, 0.0
    %v1331 = vmax.f32 %v1171, 0.0
    %v1332 = vmax.f32 %v1173, 0.0
    %v1333 = vmax.f32 %v1175, 0.0
    %v1334 = vmax.f32 %v1177, 0.0
    %v1335 = vmax.f32 %v1181, 0.0
    %v1336 = vmax.f32 %v1183, 0.0
    %v1337 = vmax.f32 %v1185, 0.0
    %v1338 = vmax.f32 %v1187, 0.0
    %v1339 = vmax.f32 %v1191, 0.0
    %v1340 = vmax.f32 %v1193, 0.0
    %v1341 = vmax.f32 %v1195, 0.0
    %v1342 = vmax.f32 %v1197, 0.0
    %v1343 = vmax.f32 %v1201, 0.0
    %v1344 = vmax.f32 %v1203, 0.0
    %v1345 = vmax.f32 %v1205, 0.0
    %v1346 = vmax.f32 %v1207, 0.0
    %v1347 = vmax.f32 %v1211, 0.0
    %v1348 = vmax.f32 %v1213, 0.0
    %v1349 = vmax.f32 %v1215, 0.0
    %v1350 = vmax.f32 %v1217, 0.0
    %v1351 = vmax.f32 %v1221, 0.0
    %v1352 = vmax.f32 %v1223, 0.0
    %v1353 = vmax.f32 %v1225, 0.0
    %v1354 = vmax.f32 %v1227, 0.0
    %v1355 = vmax.f32 %v1231, 0.0
    %v1356 = vmax.f32 %v1233, 0.0
    %v1357 = vmax.f32 %v1235, 0.0
    %v1358 = vmax.f32 %v1237, 0.0
    %v1359 = vmax.f32 %v1241, 0.0
    %v1360 = vmax.f32 %v1243, 0.0
    %v1361 = vmax.f32 %v1245, 0.0
    %v1362 = vmax.f32 %v1247, 0.0
    %v1363 = vmax.f32 %v1251, 0.0
    %v1364 = vmax.f32 %v1253, 0.0
    %v1365 = vmax.f32 %v1255, 0.0
    %v1366 = vmax.f32 %v1257, 0.0
    %v1367 = vmax.f32 %v1261, 0.0
    %v1368 = vmax.f32 %v1263, 0.0
    %v1369 = vmax.f32 %v1265, 0.0
    %v1370 = vmax.f32 %v1267, 0.0
    %v1371 = vmax.f32 %v1271, 0.0
    %v1372 = vmax.f32 %v1273, 0.0
    %v1373 = vmax.f32 %v1275, 0.0
    %v1374 = vmax.f32 %v1277, 0.0
    %v1375 = vld [vmem:[%s3] sm:$0x3]
    %v1377 = vlaneseq
    %v1378 = vshrl.u32 %v1377, 7
    %v1379 = vsub.s32 0, %v1378
    %v1380 = vrot.slane %v1375, %v1379
    %v1381 = vlaneseq
    %v1382 = vshrl.u32 %v1381, 7
    %v1383 = vsub.s32 1, %v1382
    %v1384 = vrot.slane %v1375, %v1383
    %v1387 = vmul.f32 %v1279, %v1380
    %v1388 = vmul.f32 %v1280, %v1384
    %v1389 = vmul.f32 %v1281, %v1380
    %v1390 = vmul.f32 %v1282, %v1384
    %v1391 = vmul.f32 %v1283, %v1380
    %v1392 = vmul.f32 %v1284, %v1384
    %v1393 = vmul.f32 %v1285, %v1380
    %v1394 = vmul.f32 %v1286, %v1384
    %v1395 = vmul.f32 %v1287, %v1380
    %v1396 = vmul.f32 %v1288, %v1384
    %v1397 = vmul.f32 %v1289, %v1380
    %v1398 = vmul.f32 %v1290, %v1384
    %v1399 = vmul.f32 %v1291, %v1380
    %v1400 = vmul.f32 %v1292, %v1384
    %v1401 = vmul.f32 %v1293, %v1380
    %v1402 = vmul.f32 %v1294, %v1384
    %v1403 = vmul.f32 %v1295, %v1380
    %v1404 = vmul.f32 %v1296, %v1384
    %v1405 = vmul.f32 %v1297, %v1380
    %v1406 = vmul.f32 %v1298, %v1384
    %v1407 = vmul.f32 %v1299, %v1380
    %v1408 = vmul.f32 %v1300, %v1384
    %v1409 = vmul.f32 %v1301, %v1380
    %v1410 = vmul.f32 %v1302, %v1384
    %v1411 = vmul.f32 %v1303, %v1380
    %v1412 = vmul.f32 %v1304, %v1384
    %v1413 = vmul.f32 %v1305, %v1380
    %v1414 = vmul.f32 %v1306, %v1384
    %v1415 = vmul.f32 %v1307, %v1380
    %v1416 = vmul.f32 %v1308, %v1384
    %v1417 = vmul.f32 %v1309, %v1380
    %v1418 = vmul.f32 %v1310, %v1384
    %v1419 = vmul.f32 %v1311, %v1380
    %v1420 = vmul.f32 %v1312, %v1384
    %v1421 = vmul.f32 %v1313, %v1380
    %v1422 = vmul.f32 %v1314, %v1384
    %v1423 = vmul.f32 %v1315, %v1380
    %v1424 = vmul.f32 %v1316, %v1384
    %v1425 = vmul.f32 %v1317, %v1380
    %v1426 = vmul.f32 %v1318, %v1384
    %v1427 = vmul.f32 %v1319, %v1380
    %v1428 = vmul.f32 %v1320, %v1384
    %v1429 = vmul.f32 %v1321, %v1380
    %v1430 = vmul.f32 %v1322, %v1384
    %v1431 = vmul.f32 %v1323, %v1380
    %v1432 = vmul.f32 %v1324, %v1384
    %v1433 = vmul.f32 %v1325, %v1380
    %v1434 = vmul.f32 %v1326, %v1384
    %v1435 = vmul.f32 %v1327, %v1380
    %v1436 = vmul.f32 %v1328, %v1384
    %v1437 = vmul.f32 %v1329, %v1380
    %v1438 = vmul.f32 %v1330, %v1384
    %v1439 = vmul.f32 %v1331, %v1380
    %v1440 = vmul.f32 %v1332, %v1384
    %v1441 = vmul.f32 %v1333, %v1380
    %v1442 = vmul.f32 %v1334, %v1384
    %v1443 = vmul.f32 %v1335, %v1380
    %v1444 = vmul.f32 %v1336, %v1384
    %v1445 = vmul.f32 %v1337, %v1380
    %v1446 = vmul.f32 %v1338, %v1384
    %v1447 = vmul.f32 %v1339, %v1380
    %v1448 = vmul.f32 %v1340, %v1384
    %v1449 = vmul.f32 %v1341, %v1380
    %v1450 = vmul.f32 %v1342, %v1384
    %v1451 = vmul.f32 %v1343, %v1380
    %v1452 = vmul.f32 %v1344, %v1384
    %v1453 = vmul.f32 %v1345, %v1380
    %v1454 = vmul.f32 %v1346, %v1384
    %v1455 = vmul.f32 %v1347, %v1380
    %v1456 = vmul.f32 %v1348, %v1384
    %v1457 = vmul.f32 %v1349, %v1380
    %v1458 = vmul.f32 %v1350, %v1384
    %v1459 = vmul.f32 %v1351, %v1380
    %v1460 = vmul.f32 %v1352, %v1384
    %v1461 = vmul.f32 %v1353, %v1380
    %v1462 = vmul.f32 %v1354, %v1384
    %v1463 = vmul.f32 %v1355, %v1380
    %v1464 = vmul.f32 %v1356, %v1384
    %v1465 = vmul.f32 %v1357, %v1380
    %v1466 = vmul.f32 %v1358, %v1384
    %v1467 = vmul.f32 %v1359, %v1380
    %v1468 = vmul.f32 %v1360, %v1384
    %v1469 = vmul.f32 %v1361, %v1380
    %v1470 = vmul.f32 %v1362, %v1384
    %v1471 = vmul.f32 %v1363, %v1380
    %v1472 = vmul.f32 %v1364, %v1384
    %v1473 = vmul.f32 %v1365, %v1380
    %v1474 = vmul.f32 %v1366, %v1384
    %v1475 = vmul.f32 %v1367, %v1380
    %v1476 = vmul.f32 %v1368, %v1384
    %v1477 = vmul.f32 %v1369, %v1380
    %v1478 = vmul.f32 %v1370, %v1384
    %v1479 = vmul.f32 %v1371, %v1380
    %v1480 = vmul.f32 %v1372, %v1384
    %v1481 = vmul.f32 %v1373, %v1380
    %v1482 = vmul.f32 %v1374, %v1384
    %v1483 = vadd.f32 %v1387, %v1388
    %1484 = vadd.xlane.f32.xlu0 %v1483
    %v1485 = vpop.xlane.xlu0 %1484
    %v1486 = vadd.f32 %v1389, %v1390
    %1487 = vadd.xlane.f32.xlu0 %v1486
    %v1488 = vpop.xlane.xlu0 %1487
    %v1489 = vadd.f32 %v1391, %v1392
    %1490 = vadd.xlane.f32.xlu0 %v1489
    %v1491 = vpop.xlane.xlu0 %1490
    %v1492 = vadd.f32 %v1393, %v1394
    %1493 = vadd.xlane.f32.xlu0 %v1492
    %v1494 = vpop.xlane.xlu0 %1493
    %v1495 = vadd.f32 %v1395, %v1396
    %1496 = vadd.xlane.f32.xlu0 %v1495
    %v1497 = vpop.xlane.xlu0 %1496
    %v1498 = vadd.f32 %v1397, %v1398
    %1499 = vadd.xlane.f32.xlu0 %v1498
    %v1500 = vpop.xlane.xlu0 %1499
    %v1501 = vadd.f32 %v1399, %v1400
    %1502 = vadd.xlane.f32.xlu0 %v1501
    %v1503 = vpop.xlane.xlu0 %1502
    %v1504 = vadd.f32 %v1401, %v1402
    %1505 = vadd.xlane.f32.xlu0 %v1504
    %v1506 = vpop.xlane.xlu0 %1505
    %v1507 = vadd.f32 %v1403, %v1404
    %1508 = vadd.xlane.f32.xlu0 %v1507
    %v1509 = vpop.xlane.xlu0 %1508
    %v1510 = vadd.f32 %v1405, %v1406
    %1511 = vadd.xlane.f32.xlu0 %v1510
    %v1512 = vpop.xlane.xlu0 %1511
    %v1513 = vadd.f32 %v1407, %v1408
    %1514 = vadd.xlane.f32.xlu0 %v1513
    %v1515 = vpop.xlane.xlu0 %1514
    %v1516 = vadd.f32 %v1409, %v1410
    %1517 = vadd.xlane.f32.xlu0 %v1516
    %v1518 = vpop.xlane.xlu0 %1517
    %v1519 = vadd.f32 %v1411, %v1412
    %1520 = vadd.xlane.f32.xlu0 %v1519
    %v1521 = vpop.xlane.xlu0 %1520
    %v1522 = vadd.f32 %v1413, %v1414
    %1523 = vadd.xlane.f32.xlu0 %v1522
    %v1524 = vpop.xlane.xlu0 %1523
    %v1525 = vadd.f32 %v1415, %v1416
    %1526 = vadd.xlane.f32.xlu0 %v1525
    %v1527 = vpop.xlane.xlu0 %1526
    %v1528 = vadd.f32 %v1417, %v1418
    %1529 = vadd.xlane.f32.xlu0 %v1528
    %v1530 = vpop.xlane.xlu0 %1529
    %v1531 = vadd.f32 %v1419, %v1420
    %1532 = vadd.xlane.f32.xlu0 %v1531
    %v1533 = vpop.xlane.xlu0 %1532
    %v1534 = vadd.f32 %v1421, %v1422
    %1535 = vadd.xlane.f32.xlu0 %v1534
    %v1536 = vpop.xlane.xlu0 %1535
    %v1537 = vadd.f32 %v1423, %v1424
    %1538 = vadd.xlane.f32.xlu0 %v1537
    %v1539 = vpop.xlane.xlu0 %1538
    %v1540 = vadd.f32 %v1425, %v1426
    %1541 = vadd.xlane.f32.xlu0 %v1540
    %v1542 = vpop.xlane.xlu0 %1541
    %v1543 = vadd.f32 %v1427, %v1428
    %1544 = vadd.xlane.f32.xlu0 %v1543
    %v1545 = vpop.xlane.xlu0 %1544
    %v1546 = vadd.f32 %v1429, %v1430
    %1547 = vadd.xlane.f32.xlu0 %v1546
    %v1548 = vpop.xlane.xlu0 %1547
    %v1549 = vadd.f32 %v1431, %v1432
    %1550 = vadd.xlane.f32.xlu0 %v1549
    %v1551 = vpop.xlane.xlu0 %1550
    %v1552 = vadd.f32 %v1433, %v1434
    %1553 = vadd.xlane.f32.xlu0 %v1552
    %v1554 = vpop.xlane.xlu0 %1553
    %v1555 = vadd.f32 %v1435, %v1436
    %1556 = vadd.xlane.f32.xlu0 %v1555
    %v1557 = vpop.xlane.xlu0 %1556
    %v1558 = vadd.f32 %v1437, %v1438
    %1559 = vadd.xlane.f32.xlu0 %v1558
    %v1560 = vpop.xlane.xlu0 %1559
    %v1561 = vadd.f32 %v1439, %v1440
    %1562 = vadd.xlane.f32.xlu0 %v1561
    %v1563 = vpop.xlane.xlu0 %1562
    %v1564 = vadd.f32 %v1441, %v1442
    %1565 = vadd.xlane.f32.xlu0 %v1564
    %v1566 = vpop.xlane.xlu0 %1565
    %v1567 = vadd.f32 %v1443, %v1444
    %1568 = vadd.xlane.f32.xlu0 %v1567
    %v1569 = vpop.xlane.xlu0 %1568
    %v1570 = vadd.f32 %v1445, %v1446
    %1571 = vadd.xlane.f32.xlu0 %v1570
    %v1572 = vpop.xlane.xlu0 %1571
    %v1573 = vadd.f32 %v1447, %v1448
    %1574 = vadd.xlane.f32.xlu0 %v1573
    %v1575 = vpop.xlane.xlu0 %1574
    %v1576 = vadd.f32 %v1449, %v1450
    %1577 = vadd.xlane.f32.xlu0 %v1576
    %v1578 = vpop.xlane.xlu0 %1577
    %v1579 = vadd.f32 %v1451, %v1452
    %1580 = vadd.xlane.f32.xlu0 %v1579
    %v1581 = vpop.xlane.xlu0 %1580
    %v1582 = vadd.f32 %v1453, %v1454
    %1583 = vadd.xlane.f32.xlu0 %v1582
    %v1584 = vpop.xlane.xlu0 %1583
    %v1585 = vadd.f32 %v1455, %v1456
    %1586 = vadd.xlane.f32.xlu0 %v1585
    %v1587 = vpop.xlane.xlu0 %1586
    %v1588 = vadd.f32 %v1457, %v1458
    %1589 = vadd.xlane.f32.xlu0 %v1588
    %v1590 = vpop.xlane.xlu0 %1589
    %v1591 = vadd.f32 %v1459, %v1460
    %1592 = vadd.xlane.f32.xlu0 %v1591
    %v1593 = vpop.xlane.xlu0 %1592
    %v1594 = vadd.f32 %v1461, %v1462
    %1595 = vadd.xlane.f32.xlu0 %v1594
    %v1596 = vpop.xlane.xlu0 %1595
    %v1597 = vadd.f32 %v1463, %v1464
    %1598 = vadd.xlane.f32.xlu0 %v1597
    %v1599 = vpop.xlane.xlu0 %1598
    %v1600 = vadd.f32 %v1465, %v1466
    %1601 = vadd.xlane.f32.xlu0 %v1600
    %v1602 = vpop.xlane.xlu0 %1601
    %v1603 = vadd.f32 %v1467, %v1468
    %1604 = vadd.xlane.f32.xlu0 %v1603
    %v1605 = vpop.xlane.xlu0 %1604
    %v1606 = vadd.f32 %v1469, %v1470
    %1607 = vadd.xlane.f32.xlu0 %v1606
    %v1608 = vpop.xlane.xlu0 %1607
    %v1609 = vadd.f32 %v1471, %v1472
    %1610 = vadd.xlane.f32.xlu0 %v1609
    %v1611 = vpop.xlane.xlu0 %1610
    %v1612 = vadd.f32 %v1473, %v1474
    %1613 = vadd.xlane.f32.xlu0 %v1612
    %v1614 = vpop.xlane.xlu0 %1613
    %v1615 = vadd.f32 %v1475, %v1476
    %1616 = vadd.xlane.f32.xlu0 %v1615
    %v1617 = vpop.xlane.xlu0 %1616
    %v1618 = vadd.f32 %v1477, %v1478
    %1619 = vadd.xlane.f32.xlu0 %v1618
    %v1620 = vpop.xlane.xlu0 %1619
    %v1621 = vadd.f32 %v1479, %v1480
    %1622 = vadd.xlane.f32.xlu0 %v1621
    %v1623 = vpop.xlane.xlu0 %1622
    %v1624 = vadd.f32 %v1481, %v1482
    %1625 = vadd.xlane.f32.xlu0 %v1624
    %v1626 = vpop.xlane.xlu0 %1625
    %s1627 = sld [smem:[#allocation2]]
    %v1628 = vstv %s1627
    %v1629 = vadd.f32 %v1485, %v1628
    %v1630 = vadd.f32 %v1488, %v1628
    %v1631 = vadd.f32 %v1491, %v1628
    %v1632 = vadd.f32 %v1494, %v1628
    %v1633 = vadd.f32 %v1497, %v1628
    %v1634 = vadd.f32 %v1500, %v1628
    %v1635 = vadd.f32 %v1503, %v1628
    %v1636 = vadd.f32 %v1506, %v1628
    %v1637 = vadd.f32 %v1509, %v1628
    %v1638 = vadd.f32 %v1512, %v1628
    %v1639 = vadd.f32 %v1515, %v1628
    %v1640 = vadd.f32 %v1518, %v1628
    %v1641 = vadd.f32 %v1521, %v1628
    %v1642 = vadd.f32 %v1524, %v1628
    %v1643 = vadd.f32 %v1527, %v1628
    %v1644 = vadd.f32 %v1530, %v1628
    %v1645 = vadd.f32 %v1533, %v1628
    %v1646 = vadd.f32 %v1536, %v1628
    %v1647 = vadd.f32 %v1539, %v1628
    %v1648 = vadd.f32 %v1542, %v1628
    %v1649 = vadd.f32 %v1545, %v1628
    %v1650 = vadd.f32 %v1548, %v1628
    %v1651 = vadd.f32 %v1551, %v1628
    %v1652 = vadd.f32 %v1554, %v1628
    %v1653 = vadd.f32 %v1557, %v1628
    %v1654 = vadd.f32 %v1560, %v1628
    %v1655 = vadd.f32 %v1563, %v1628
    %v1656 = vadd.f32 %v1566, %v1628
    %v1657 = vadd.f32 %v1569, %v1628
    %v1658 = vadd.f32 %v1572, %v1628
    %v1659 = vadd.f32 %v1575, %v1628
    %v1660 = vadd.f32 %v1578, %v1628
    %v1661 = vadd.f32 %v1581, %v1628
    %v1662 = vadd.f32 %v1584, %v1628
    %v1663 = vadd.f32 %v1587, %v1628
    %v1664 = vadd.f32 %v1590, %v1628
    %v1665 = vadd.f32 %v1593, %v1628
    %v1666 = vadd.f32 %v1596, %v1628
    %v1667 = vadd.f32 %v1599, %v1628
    %v1668 = vadd.f32 %v1602, %v1628
    %v1669 = vadd.f32 %v1605, %v1628
    %v1670 = vadd.f32 %v1608, %v1628
    %v1671 = vadd.f32 %v1611, %v1628
    %v1672 = vadd.f32 %v1614, %v1628
    %v1673 = vadd.f32 %v1617, %v1628
    %v1674 = vadd.f32 %v1620, %v1628
    %v1675 = vadd.f32 %v1623, %v1628
    %v1676 = vadd.f32 %v1626, %v1628
    %v1677 = vxor.u32 %v1629, 2147483648
    %v1678 = vxor.u32 %v1630, 2147483648
    %v1679 = vxor.u32 %v1631, 2147483648
    %v1680 = vxor.u32 %v1632, 2147483648
    %v1681 = vxor.u32 %v1633, 2147483648
    %v1682 = vxor.u32 %v1634, 2147483648
    %v1683 = vxor.u32 %v1635, 2147483648
    %v1684 = vxor.u32 %v1636, 2147483648
    %v1685 = vxor.u32 %v1637, 2147483648
    %v1686 = vxor.u32 %v1638, 2147483648
    %v1687 = vxor.u32 %v1639, 2147483648
    %v1688 = vxor.u32 %v1640, 2147483648
    %v1689 = vxor.u32 %v1641, 2147483648
    %v1690 = vxor.u32 %v1642, 2147483648
    %v1691 = vxor.u32 %v1643, 2147483648
    %v1692 = vxor.u32 %v1644, 2147483648
    %v1693 = vxor.u32 %v1645, 2147483648
    %v1694 = vxor.u32 %v1646, 2147483648
    %v1695 = vxor.u32 %v1647, 2147483648
    %v1696 = vxor.u32 %v1648, 2147483648
    %v1697 = vxor.u32 %v1649, 2147483648
    %v1698 = vxor.u32 %v1650, 2147483648
    %v1699 = vxor.u32 %v1651, 2147483648
    %v1700 = vxor.u32 %v1652, 2147483648
    %v1701 = vxor.u32 %v1653, 2147483648
    %v1702 = vxor.u32 %v1654, 2147483648
    %v1703 = vxor.u32 %v1655, 2147483648
    %v1704 = vxor.u32 %v1656, 2147483648
    %v1705 = vxor.u32 %v1657, 2147483648
    %v1706 = vxor.u32 %v1658, 2147483648
    %v1707 = vxor.u32 %v1659, 2147483648
    %v1708 = vxor.u32 %v1660, 2147483648
    %v1709 = vxor.u32 %v1661, 2147483648
    %v1710 = vxor.u32 %v1662, 2147483648
    %v1711 = vxor.u32 %v1663, 2147483648
    %v1712 = vxor.u32 %v1664, 2147483648
    %v1713 = vxor.u32 %v1665, 2147483648
    %v1714 = vxor.u32 %v1666, 2147483648
    %v1715 = vxor.u32 %v1667, 2147483648
    %v1716 = vxor.u32 %v1668, 2147483648
    %v1717 = vxor.u32 %v1669, 2147483648
    %v1718 = vxor.u32 %v1670, 2147483648
    %v1719 = vxor.u32 %v1671, 2147483648
    %v1720 = vxor.u32 %v1672, 2147483648
    %v1721 = vxor.u32 %v1673, 2147483648
    %v1722 = vxor.u32 %v1674, 2147483648
    %v1723 = vxor.u32 %v1675, 2147483648
    %v1724 = vxor.u32 %v1676, 2147483648
    %v1725 = vmul.f32 %v1677, 1.442695
    %v1726 = vpow.pop %v1725
    %v1727 = vmul.f32 %v1678, 1.442695
    %v1728 = vpow.pop %v1727
    %v1729 = vmul.f32 %v1679, 1.442695
    %v1730 = vpow.pop %v1729
    %v1731 = vmul.f32 %v1680, 1.442695
    %v1732 = vpow.pop %v1731
    %v1733 = vmul.f32 %v1681, 1.442695
    %v1734 = vpow.pop %v1733
    %v1735 = vmul.f32 %v1682, 1.442695
    %v1736 = vpow.pop %v1735
    %v1737 = vmul.f32 %v1683, 1.442695
    %v1738 = vpow.pop %v1737
    %v1739 = vmul.f32 %v1684, 1.442695
    %v1740 = vpow.pop %v1739
    %v1741 = vmul.f32 %v1685, 1.442695
    %v1742 = vpow.pop %v1741
    %v1743 = vmul.f32 %v1686, 1.442695
    %v1744 = vpow.pop %v1743
    %v1745 = vmul.f32 %v1687, 1.442695
    %v1746 = vpow.pop %v1745
    %v1747 = vmul.f32 %v1688, 1.442695
    %v1748 = vpow.pop %v1747
    %v1749 = vmul.f32 %v1689, 1.442695
    %v1750 = vpow.pop %v1749
    %v1751 = vmul.f32 %v1690, 1.442695
    %v1752 = vpow.pop %v1751
    %v1753 = vmul.f32 %v1691, 1.442695
    %v1754 = vpow.pop %v1753
    %v1755 = vmul.f32 %v1692, 1.442695
    %v1756 = vpow.pop %v1755
    %v1757 = vmul.f32 %v1693, 1.442695
    %v1758 = vpow.pop %v1757
    %v1759 = vmul.f32 %v1694, 1.442695
    %v1760 = vpow.pop %v1759
    %v1761 = vmul.f32 %v1695, 1.442695
    %v1762 = vpow.pop %v1761
    %v1763 = vmul.f32 %v1696, 1.442695
    %v1764 = vpow.pop %v1763
    %v1765 = vmul.f32 %v1697, 1.442695
    %v1766 = vpow.pop %v1765
    %v1767 = vmul.f32 %v1698, 1.442695
    %v1768 = vpow.pop %v1767
    %v1769 = vmul.f32 %v1699, 1.442695
    %v1770 = vpow.pop %v1769
    %v1771 = vmul.f32 %v1700, 1.442695
    %v1772 = vpow.pop %v1771
    %v1773 = vmul.f32 %v1701, 1.442695
    %v1774 = vpow.pop %v1773
    %v1775 = vmul.f32 %v1702, 1.442695
    %v1776 = vpow.pop %v1775
    %v1777 = vmul.f32 %v1703, 1.442695
    %v1778 = vpow.pop %v1777
    %v1779 = vmul.f32 %v1704, 1.442695
    %v1780 = vpow.pop %v1779
    %v1781 = vmul.f32 %v1705, 1.442695
    %v1782 = vpow.pop %v1781
    %v1783 = vmul.f32 %v1706, 1.442695
    %v1784 = vpow.pop %v1783
    %v1785 = vmul.f32 %v1707, 1.442695
    %v1786 = vpow.pop %v1785
    %v1787 = vmul.f32 %v1708, 1.442695
    %v1788 = vpow.pop %v1787
    %v1789 = vmul.f32 %v1709, 1.442695
    %v1790 = vpow.pop %v1789
    %v1791 = vmul.f32 %v1710, 1.442695
    %v1792 = vpow.pop %v1791
    %v1793 = vmul.f32 %v1711, 1.442695
    %v1794 = vpow.pop %v1793
    %v1795 = vmul.f32 %v1712, 1.442695
    %v1796 = vpow.pop %v1795
    %v1797 = vmul.f32 %v1713, 1.442695
    %v1798 = vpow.pop %v1797
    %v1799 = vmul.f32 %v1714, 1.442695
    %v1800 = vpow.pop %v1799
    %v1801 = vmul.f32 %v1715, 1.442695
    %v1802 = vpow.pop %v1801
    %v1803 = vmul.f32 %v1716, 1.442695
    %v1804 = vpow.pop %v1803
    %v1805 = vmul.f32 %v1717, 1.442695
    %v1806 = vpow.pop %v1805
    %v1807 = vmul.f32 %v1718, 1.442695
    %v1808 = vpow.pop %v1807
    %v1809 = vmul.f32 %v1719, 1.442695
    %v1810 = vpow.pop %v1809
    %v1811 = vmul.f32 %v1720, 1.442695
    %v1812 = vpow.pop %v1811
    %v1813 = vmul.f32 %v1721, 1.442695
    %v1814 = vpow.pop %v1813
    %v1815 = vmul.f32 %v1722, 1.442695
    %v1816 = vpow.pop %v1815
    %v1817 = vmul.f32 %v1723, 1.442695
    %v1818 = vpow.pop %v1817
    %v1819 = vmul.f32 %v1724, 1.442695
    %v1820 = vpow.pop %v1819
    %v1821 = vadd.f32 %v1726, 1.0
    %v1822 = vadd.f32 %v1728, 1.0
    %v1823 = vadd.f32 %v1730, 1.0
    %v1824 = vadd.f32 %v1732, 1.0
    %v1825 = vadd.f32 %v1734, 1.0
    %v1826 = vadd.f32 %v1736, 1.0
    %v1827 = vadd.f32 %v1738, 1.0
    %v1828 = vadd.f32 %v1740, 1.0
    %v1829 = vadd.f32 %v1742, 1.0
    %v1830 = vadd.f32 %v1744, 1.0
    %v1831 = vadd.f32 %v1746, 1.0
    %v1832 = vadd.f32 %v1748, 1.0
    %v1833 = vadd.f32 %v1750, 1.0
    %v1834 = vadd.f32 %v1752, 1.0
    %v1835 = vadd.f32 %v1754, 1.0
    %v1836 = vadd.f32 %v1756, 1.0
    %v1837 = vadd.f32 %v1758, 1.0
    %v1838 = vadd.f32 %v1760, 1.0
    %v1839 = vadd.f32 %v1762, 1.0
    %v1840 = vadd.f32 %v1764, 1.0
    %v1841 = vadd.f32 %v1766, 1.0
    %v1842 = vadd.f32 %v1768, 1.0
    %v1843 = vadd.f32 %v1770, 1.0
    %v1844 = vadd.f32 %v1772, 1.0
    %v1845 = vadd.f32 %v1774, 1.0
    %v1846 = vadd.f32 %v1776, 1.0
    %v1847 = vadd.f32 %v1778, 1.0
    %v1848 = vadd.f32 %v1780, 1.0
    %v1849 = vadd.f32 %v1782, 1.0
    %v1850 = vadd.f32 %v1784, 1.0
    %v1851 = vadd.f32 %v1786, 1.0
    %v1852 = vadd.f32 %v1788, 1.0
    %v1853 = vadd.f32 %v1790, 1.0
    %v1854 = vadd.f32 %v1792, 1.0
    %v1855 = vadd.f32 %v1794, 1.0
    %v1856 = vadd.f32 %v1796, 1.0
    %v1857 = vadd.f32 %v1798, 1.0
    %v1858 = vadd.f32 %v1800, 1.0
    %v1859 = vadd.f32 %v1802, 1.0
    %v1860 = vadd.f32 %v1804, 1.0
    %v1861 = vadd.f32 %v1806, 1.0
    %v1862 = vadd.f32 %v1808, 1.0
    %v1863 = vadd.f32 %v1810, 1.0
    %v1864 = vadd.f32 %v1812, 1.0
    %v1865 = vadd.f32 %v1814, 1.0
    %v1866 = vadd.f32 %v1816, 1.0
    %v1867 = vadd.f32 %v1818, 1.0
    %v1868 = vadd.f32 %v1820, 1.0
    %v1869 = vrcp.pop %v1821
    %v1870 = vmul.f32 1.0, %v1869
    %v1871 = vrcp.pop %v1822
    %v1872 = vmul.f32 1.0, %v1871
    %v1873 = vrcp.pop %v1823
    %v1874 = vmul.f32 1.0, %v1873
    %v1875 = vrcp.pop %v1824
    %v1876 = vmul.f32 1.0, %v1875
    %v1877 = vrcp.pop %v1825
    %v1878 = vmul.f32 1.0, %v1877
    %v1879 = vrcp.pop %v1826
    %v1880 = vmul.f32 1.0, %v1879
    %v1881 = vrcp.pop %v1827
    %v1882 = vmul.f32 1.0, %v1881
    %v1883 = vrcp.pop %v1828
    %v1884 = vmul.f32 1.0, %v1883
    %v1885 = vrcp.pop %v1829
    %v1886 = vmul.f32 1.0, %v1885
    %v1887 = vrcp.pop %v1830
    %v1888 = vmul.f32 1.0, %v1887
    %v1889 = vrcp.pop %v1831
    %v1890 = vmul.f32 1.0, %v1889
    %v1891 = vrcp.pop %v1832
    %v1892 = vmul.f32 1.0, %v1891
    %v1893 = vrcp.pop %v1833
    %v1894 = vmul.f32 1.0, %v1893
    %v1895 = vrcp.pop %v1834
    %v1896 = vmul.f32 1.0, %v1895
    %v1897 = vrcp.pop %v1835
    %v1898 = vmul.f32 1.0, %v1897
    %v1899 = vrcp.pop %v1836
    %v1900 = vmul.f32 1.0, %v1899
    %v1901 = vrcp.pop %v1837
    %v1902 = vmul.f32 1.0, %v1901
    %v1903 = vrcp.pop %v1838
    %v1904 = vmul.f32 1.0, %v1903
    %v1905 = vrcp.pop %v1839
    %v1906 = vmul.f32 1.0, %v1905
    %v1907 = vrcp.pop %v1840
    %v1908 = vmul.f32 1.0, %v1907
    %v1909 = vrcp.pop %v1841
    %v1910 = vmul.f32 1.0, %v1909
    %v1911 = vrcp.pop %v1842
    %v1912 = vmul.f32 1.0, %v1911
    %v1913 = vrcp.pop %v1843
    %v1914 = vmul.f32 1.0, %v1913
    %v1915 = vrcp.pop %v1844
    %v1916 = vmul.f32 1.0, %v1915
    %v1917 = vrcp.pop %v1845
    %v1918 = vmul.f32 1.0, %v1917
    %v1919 = vrcp.pop %v1846
    %v1920 = vmul.f32 1.0, %v1919
    %v1921 = vrcp.pop %v1847
    %v1922 = vmul.f32 1.0, %v1921
    %v1923 = vrcp.pop %v1848
    %v1924 = vmul.f32 1.0, %v1923
    %v1925 = vrcp.pop %v1849
    %v1926 = vmul.f32 1.0, %v1925
    %v1927 = vrcp.pop %v1850
    %v1928 = vmul.f32 1.0, %v1927
    %v1929 = vrcp.pop %v1851
    %v1930 = vmul.f32 1.0, %v1929
    %v1931 = vrcp.pop %v1852
    %v1932 = vmul.f32 1.0, %v1931
    %v1933 = vrcp.pop %v1853
    %v1934 = vmul.f32 1.0, %v1933
    %v1935 = vrcp.pop %v1854
    %v1936 = vmul.f32 1.0, %v1935
    %v1937 = vrcp.pop %v1855
    %v1938 = vmul.f32 1.0, %v1937
    %v1939 = vrcp.pop %v1856
    %v1940 = vmul.f32 1.0, %v1939
    %v1941 = vrcp.pop %v1857
    %v1942 = vmul.f32 1.0, %v1941
    %v1943 = vrcp.pop %v1858
    %v1944 = vmul.f32 1.0, %v1943
    %v1945 = vrcp.pop %v1859
    %v1946 = vmul.f32 1.0, %v1945
    %v1947 = vrcp.pop %v1860
    %v1948 = vmul.f32 1.0, %v1947
    %v1949 = vrcp.pop %v1861
    %v1950 = vmul.f32 1.0, %v1949
    %v1951 = vrcp.pop %v1862
    %v1952 = vmul.f32 1.0, %v1951
    %v1953 = vrcp.pop %v1863
    %v1954 = vmul.f32 1.0, %v1953
    %v1955 = vrcp.pop %v1864
    %v1956 = vmul.f32 1.0, %v1955
    %v1957 = vrcp.pop %v1865
    %v1958 = vmul.f32 1.0, %v1957
    %v1959 = vrcp.pop %v1866
    %v1960 = vmul.f32 1.0, %v1959
    %v1961 = vrcp.pop %v1867
    %v1962 = vmul.f32 1.0, %v1961
    %v1963 = vrcp.pop %v1868
    %v1964 = vmul.f32 1.0, %v1963
    %vm1965 = vcmask 7168
    %1966 = vst.msk [vmem:[%s5] sm:$0xff] %vm1965, %v1870
    %1967 = vst.msk [vmem:[%s5 + $0x8] sm:$0xff] %vm1965, %v1872
    %1968 = vst.msk [vmem:[%s5 + $0x10] sm:$0xff] %vm1965, %v1874
    %1969 = vst.msk [vmem:[%s5 + $0x18] sm:$0xff] %vm1965, %v1876
    %1970 = vst.msk [vmem:[%s5 + $0x20] sm:$0xff] %vm1965, %v1878
    %1971 = vst.msk [vmem:[%s5 + $0x28] sm:$0xff] %vm1965, %v1880
    %1972 = vst.msk [vmem:[%s5 + $0x30] sm:$0xff] %vm1965, %v1882
    %1973 = vst.msk [vmem:[%s5 + $0x38] sm:$0xff] %vm1965, %v1884
    %1974 = vst.msk [vmem:[%s5 + $0x40] sm:$0xff] %vm1965, %v1886
    %1975 = vst.msk [vmem:[%s5 + $0x48] sm:$0xff] %vm1965, %v1888
    %1976 = vst.msk [vmem:[%s5 + $0x50] sm:$0xff] %vm1965, %v1890
    %1977 = vst.msk [vmem:[%s5 + $0x58] sm:$0xff] %vm1965, %v1892
    %1978 = vst.msk [vmem:[%s5 + $0x60] sm:$0xff] %vm1965, %v1894
    %1979 = vst.msk [vmem:[%s5 + $0x68] sm:$0xff] %vm1965, %v1896
    %1980 = vst.msk [vmem:[%s5 + $0x70] sm:$0xff] %vm1965, %v1898
    %1981 = vst.msk [vmem:[%s5 + $0x78] sm:$0xff] %vm1965, %v1900
    %1982 = vst.msk [vmem:[%s5 + $0x80] sm:$0xff] %vm1965, %v1902
    %1983 = vst.msk [vmem:[%s5 + $0x88] sm:$0xff] %vm1965, %v1904
    %1984 = vst.msk [vmem:[%s5 + $0x90] sm:$0xff] %vm1965, %v1906
    %1985 = vst.msk [vmem:[%s5 + $0x98] sm:$0xff] %vm1965, %v1908
    %1986 = vst.msk [vmem:[%s5 + $0xa0] sm:$0xff] %vm1965, %v1910
    %1987 = vst.msk [vmem:[%s5 + $0xa8] sm:$0xff] %vm1965, %v1912
    %1988 = vst.msk [vmem:[%s5 + $0xb0] sm:$0xff] %vm1965, %v1914
    %1989 = vst.msk [vmem:[%s5 + $0xb8] sm:$0xff] %vm1965, %v1916
    %1990 = vst.msk [vmem:[%s5 + $0xc0] sm:$0xff] %vm1965, %v1918
    %1991 = vst.msk [vmem:[%s5 + $0xc8] sm:$0xff] %vm1965, %v1920
    %1992 = vst.msk [vmem:[%s5 + $0xd0] sm:$0xff] %vm1965, %v1922
    %1993 = vst.msk [vmem:[%s5 + $0xd8] sm:$0xff] %vm1965, %v1924
    %1994 = vst.msk [vmem:[%s5 + $0xe0] sm:$0xff] %vm1965, %v1926
    %1995 = vst.msk [vmem:[%s5 + $0xe8] sm:$0xff] %vm1965, %v1928
    %1996 = vst.msk [vmem:[%s5 + $0xf0] sm:$0xff] %vm1965, %v1930
    %1997 = vst.msk [vmem:[%s5 + $0xf8] sm:$0xff] %vm1965, %v1932
    %1998 = vst.msk [vmem:[%s5 + $0x100] sm:$0xff] %vm1965, %v1934
    %1999 = vst.msk [vmem:[%s5 + $0x108] sm:$0xff] %vm1965, %v1936
    %2000 = vst.msk [vmem:[%s5 + $0x110] sm:$0xff] %vm1965, %v1938
    %2001 = vst.msk [vmem:[%s5 + $0x118] sm:$0xff] %vm1965, %v1940
    %2002 = vst.msk [vmem:[%s5 + $0x120] sm:$0xff] %vm1965, %v1942
    %2003 = vst.msk [vmem:[%s5 + $0x128] sm:$0xff] %vm1965, %v1944
    %2004 = vst.msk [vmem:[%s5 + $0x130] sm:$0xff] %vm1965, %v1946
    %2005 = vst.msk [vmem:[%s5 + $0x138] sm:$0xff] %vm1965, %v1948
    %2006 = vst.msk [vmem:[%s5 + $0x140] sm:$0xff] %vm1965, %v1950
    %2007 = vst.msk [vmem:[%s5 + $0x148] sm:$0xff] %vm1965, %v1952
    %2008 = vst.msk [vmem:[%s5 + $0x150] sm:$0xff] %vm1965, %v1954
    %2009 = vst.msk [vmem:[%s5 + $0x158] sm:$0xff] %vm1965, %v1956
    %2010 = vst.msk [vmem:[%s5 + $0x160] sm:$0xff] %vm1965, %v1958
    %2011 = vst.msk [vmem:[%s5 + $0x168] sm:$0xff] %vm1965, %v1960
    %2012 = vst.msk [vmem:[%s5 + $0x170] sm:$0xff] %vm1965, %v1962
    %2013 = vst.msk [vmem:[%s5 + $0x178] sm:$0xff] %vm1965, %v1964
    // Predicated region
    $region30: #{tpu_custom_call.1} parent=1 // pred_check
      _
    $region31: #{tpu_custom_call.1} parent=1 // pred_check_branch
      %2015 = sbr.rel (0) target = $region33
    $region32: #{tpu_custom_call.1} parent=1 // pred_region
      _
    $region33: #{tpu_custom_call.1} parent=1 // pred_fallthru
      _
    // Predicated region
    $region34: #{tpu_custom_call.1} parent=1 // pred_check
      _
    $region35: #{tpu_custom_call.1} parent=1 // pred_check_branch
      %2017 = sbr.rel (0) target = $region37
    $region36: #{tpu_custom_call.1} parent=1 // pred_region
      _
    $region37: #{tpu_custom_call.1} parent=1 // pred_fallthru
      _
    %2018 = vsyncpa [#allocation4], 1
    %2019 = vsyncpa [#allocation6], 1

</llo_original>
